<compile_context>
chip_gen: v5e
topology: v5e:2x2
jax: 0.10.0
libtpu: 0.0.40
codegen_flags: <defaults>
</compile_context>

<pallas_src>
import math

import jax
import jax.numpy as jnp
from jax.experimental import pallas as pl
from jax.experimental.pallas import tpu as pltpu

LN_EPS = 1e-5
_GELU_K = math.sqrt(2.0 / math.pi)


def _layernorm(h, w, b):
    """h: (S, C) f32; w, b: (1, C) f32."""
    mu = jnp.mean(h, axis=-1, keepdims=True)
    var = jnp.mean(jnp.square(h - mu), axis=-1, keepdims=True)
    return (h - mu) * jax.lax.rsqrt(var + LN_EPS) * w + b


def _tpu_vmem_capacity_bytes():
    try:
        return int(pltpu.get_tpu_info().vmem_capacity_bytes)
    except Exception:
        return 64 * 1024 * 1024  # conservative (v7x-sized) fallback


def _pick_tile(t, target, align):
    """Largest divisor of t that is <= target and a multiple of `align`; falls back to t."""
    if t <= target:
        return t
    d = (target // align) * align
    while d >= align:
        if t % d == 0:
            return d
        d -= align
    return t


def _pick_multiple(t, tk, target):
    """Largest multiple of tk that divides t and is <= max(target, tk)."""
    n = t // tk
    m = max(1, min(n, target // tk))
    while n % m:
        m -= 1
    return tk * m


# ---------------------------------------------------------------------------
# Kernel 1: LN1 + fused QKV projection, emitting q/k/v in attention layout.
#   q: (B, H, T, D) bf16, pre-scaled by 1/sqrt(D)
#   k: (B, H, D, T) bf16 (pre-transposed, lane-dense)
#   v: (B, H, T, D) bf16
# ---------------------------------------------------------------------------
def _ln_qkv_kernel(x_ref, ln1w_ref, ln1b_ref, wqkv_ref, q_ref, k_ref, v_ref):
    _, H, _, D = q_ref.shape
    C = H * D
    scale = 1.0 / math.sqrt(D)

    x = x_ref[0]                                             # (TS, C) f32
    h1 = _layernorm(x, ln1w_ref[...], ln1b_ref[...])         # f32 stats
    qkv = jnp.dot(h1.astype(jnp.bfloat16), wqkv_ref[...],    # bf16 x bf16 -> f32 acc
                  preferred_element_type=jnp.float32)        # (TS, 3C)

    q_all = (qkv[:, :C] * scale).astype(jnp.bfloat16)        # fold attention scale here
    k_t = qkv[:, C:2 * C].astype(jnp.bfloat16).T             # (C, TS) one transpose
    v_all = qkv[:, 2 * C:].astype(jnp.bfloat16)

    for h in range(H):
        sl = slice(h * D, (h + 1) * D)
        q_ref[0, h] = q_all[:, sl]                           # (TS, D)
        k_ref[0, h] = k_t[sl, :]                             # (D, TS) sublane slice
        v_ref[0, h] = v_all[:, sl]                           # (TS, D)


# ---------------------------------------------------------------------------
# Kernel 2: flash-style causal attention + out-proj + residual + LN2 + MLP + residual.
# Grid: (batch, q tiles, kv tiles); kv is the "arbitrary" reduction axis.
# ---------------------------------------------------------------------------
def _attn_mlp_kernel(x_ref, q_ref, k_ref, v_ref,
                     wattn_ref, battn_ref,
                     ln2w_ref, ln2b_ref,
                     wfc_ref, bfc_ref,
                     wmlp_ref, bmlp_ref,
                     out_ref,
                     m_sc, l_sc, acc_sc, ycat_sc):
    qi = pl.program_id(1)
    ki = pl.program_id(2)

    _, H, TQ, D = q_ref.shape
    TK = k_ref.shape[3]
    R = TQ // TK                       # kv blocks per q block (static)
    last_k = (qi + 1) * R - 1          # last contributing kv block for this q tile

    @pl.when(ki == 0)
    def _init():
        m_sc[...] = jnp.full(m_sc.shape, -1e30, dtype=m_sc.dtype)
        l_sc[...] = jnp.zeros(l_sc.shape, dtype=l_sc.dtype)
        acc_sc[...] = jnp.zeros(acc_sc.shape, dtype=acc_sc.dtype)

    def flash_step(masked):
        q = q_ref[0]                   # (H, TQ, D) bf16, already scaled
        k = k_ref[0]                   # (H, D, TK) bf16 (k^T)
        v = v_ref[0]                   # (H, TK, D) bf16

        # Head-batched scores; both operands already in natural MXU layout.
        s = jnp.einsum("hqd,hdk->hqk", q, k,
                       preferred_element_type=jnp.float32)   # (H, TQ, TK)

        if masked:
            # Only diagonal-band blocks pay for the mask.  Every row has at least one
            # unmasked key (its own diagonal), so the -1e30 fill never produces NaNs.
            row = jax.lax.broadcasted_iota(jnp.int32, (TQ, TK), 0)
            col = jax.lax.broadcasted_iota(jnp.int32, (TQ, TK), 1)
            keep = (qi * TQ + row) >= (ki * TK + col)
            s = jnp.where(keep, s, -1e30)

        m_prev = m_sc[...]                                    # (H, TQ, 1) f32
        m_new = jnp.maximum(m_prev, jnp.max(s, axis=-1, keepdims=True))
        alpha = jnp.exp(m_prev - m_new)
        # bf16 exponent (EUP bf16 on v6e/v7x); l/acc accumulation stays f32.
        p = jnp.exp((s - m_new).astype(jnp.bfloat16))         # (H, TQ, TK) bf16
        l_sc[...] = alpha * l_sc[...] + jnp.sum(p, axis=-1, keepdims=True,
                                                dtype=jnp.float32)
        acc_sc[...] = alpha * acc_sc[...] + jnp.einsum(
            "hqk,hkd->hqd", p, v, preferred_element_type=jnp.float32)
        m_sc[...] = m_new

    # Strictly-below-diagonal blocks: no mask needed.
    @pl.when(ki < qi * R)
    def _interior():
        flash_step(masked=False)

    # Diagonal-band blocks: apply the causal mask.
    @pl.when(jnp.logical_and(ki >= qi * R, ki <= last_k))
    def _diag():
        flash_step(masked=True)

    # Finalize at the last *contributing* kv block (not the last grid step).
    @pl.when(ki == last_k)
    def _finalize():
        x = x_ref[0]                                          # (TQ, C) f32
        inv_l = pl.reciprocal(l_sc[...], approx=True)         # EUP; ~2^-12 rel err (inference)
        # Reassemble heads into lane-dense (TQ, C) bf16, fusing the 1/l normalization.
        D_ = D
        for h in range(H):
            ycat_sc[:, h * D_:(h + 1) * D_] = (acc_sc[h] * inv_l[h]).astype(ycat_sc.dtype)

        attn_out = jnp.dot(ycat_sc[...], wattn_ref[...],
                           preferred_element_type=jnp.float32) + battn_ref[...]
        x1 = x + attn_out                                     # residual (f32)

        h2 = _layernorm(x1, ln2w_ref[...], ln2b_ref[...])
        f = jnp.dot(h2.astype(jnp.bfloat16), wfc_ref[...],
                    preferred_element_type=jnp.float32) + bfc_ref[...]
        g = 0.5 * f * (1.0 + jnp.tanh(_GELU_K * (f + 0.044715 * f * f * f)))
        mlp_out = jnp.dot(g.astype(jnp.bfloat16), wmlp_ref[...],
                          preferred_element_type=jnp.float32) + bmlp_ref[...]

        out_ref[0] = (x1 + mlp_out).astype(out_ref.dtype)


# ---------------------------------------------------------------------------
# Wrapper
# ---------------------------------------------------------------------------
def block_forward(x, params, n_head):
    """x: (B, T, C) float32. params: dict (matmul weights bf16 + transposed, rest f32)."""
    B, T, C = x.shape
    F = 4 * C
    H = n_head
    D = C // H
    assert C % H == 0

    vmem_cap = _tpu_vmem_capacity_bytes()
    vmem_limit = int(vmem_cap * 3 // 4)                 # ~48 MiB on v7x, ~96 MiB on v5e/v6e
    big_vmem = vmem_cap >= 100 * 1024 * 1024            # 128-MiB parts (v5e/v6e)

    # kv/seq tiles sit on the lane dim of k^T -> must be 128-aligned (or == T).
    TS1 = _pick_tile(T, 512 if big_vmem else 256, 128)  # kernel-1 seq tile
    TK = _pick_tile(T, 256, 128)                        # kv tile
    TQ = _pick_multiple(T, TK, 512 if big_vmem else 256)  # q tile (multiple of TK)
    assert T % TS1 == 0 and T % TQ == 0 and T % TK == 0 and TQ % TK == 0, \
        f"sequence length {T} could not be tiled cleanly (TS1={TS1}, TQ={TQ}, TK={TK})"
    R = TQ // TK

    def const_spec(shape):
        # Constant-index blocks are DMA'd once: single buffer (no dead double-buffer).
        return pl.BlockSpec(shape, lambda *_: (0,) * len(shape),
                            pipeline_mode=pl.Buffered(1))

    # ---- kernel 1: LN1 + QKV projection -> q/k^T/v in attention layout ----
    q, k, v = pl.pallas_call(
        _ln_qkv_kernel,
        out_shape=(
            jax.ShapeDtypeStruct((B, H, T, D), jnp.bfloat16),   # q (pre-scaled)
            jax.ShapeDtypeStruct((B, H, D, T), jnp.bfloat16),   # k^T (lane-dense)
            jax.ShapeDtypeStruct((B, H, T, D), jnp.bfloat16),   # v
        ),
        grid_spec=pltpu.PrefetchScalarGridSpec(
            num_scalar_prefetch=0,
            grid=(B, T // TS1),
            in_specs=[
                pl.BlockSpec((1, TS1, C), lambda b, t: (b, t, 0)),   # x
                const_spec((1, C)), const_spec((1, C)),              # ln1 w, b
                const_spec((C, 3 * C)),                              # Wqkv^T (bf16)
            ],
            out_specs=[
                pl.BlockSpec((1, H, TS1, D), lambda b, t: (b, 0, t, 0)),
                pl.BlockSpec((1, H, D, TS1), lambda b, t: (b, 0, 0, t)),
                pl.BlockSpec((1, H, TS1, D), lambda b, t: (b, 0, t, 0)),
            ],
        ),
        compiler_params=pltpu.CompilerParams(
            dimension_semantics=("parallel", "parallel"),
            vmem_limit_bytes=vmem_limit),
    )(x, params["ln1_w"], params["ln1_b"], params["wqkv_t"])

    # k/v block index clamped to the last contributing block: causally-skipped grid
    # steps reuse the already-resident tile and issue no new DMA.
    def kv_blk(qi, ki):
        return jnp.minimum(ki, (qi + 1) * R - 1)

    out = pl.pallas_call(
        _attn_mlp_kernel,
        out_shape=jax.ShapeDtypeStruct((B, T, C), x.dtype),
        grid_spec=pltpu.PrefetchScalarGridSpec(
            num_scalar_prefetch=0,
            grid=(B, T // TQ, T // TK),
            in_specs=[
                pl.BlockSpec((1, TQ, C), lambda b, qi, ki: (b, qi, 0)),            # x
                pl.BlockSpec((1, H, TQ, D), lambda b, qi, ki: (b, 0, qi, 0)),      # q
                pl.BlockSpec((1, H, D, TK), lambda b, qi, ki: (b, 0, 0, kv_blk(qi, ki))),  # k^T
                pl.BlockSpec((1, H, TK, D), lambda b, qi, ki: (b, 0, kv_blk(qi, ki), 0)),  # v
                const_spec((C, C)), const_spec((1, C)),    # Wattn^T, battn
                const_spec((1, C)), const_spec((1, C)),    # ln2 w, b
                const_spec((C, F)), const_spec((1, F)),    # Wfc^T, bfc
                const_spec((F, C)), const_spec((1, C)),    # Wmlp^T, bmlp
            ],
            out_specs=pl.BlockSpec((1, TQ, C), lambda b, qi, ki: (b, qi, 0)),
            scratch_shapes=[
                pltpu.VMEM((H, TQ, 1), jnp.float32),    # running max m
                pltpu.VMEM((H, TQ, 1), jnp.float32),    # running sum l
                pltpu.VMEM((H, TQ, D), jnp.float32),    # running acc (per head)
                pltpu.VMEM((TQ, C), jnp.bfloat16),      # concatenated-head scratch
            ],
        ),
        compiler_params=pltpu.CompilerParams(
            dimension_semantics=("parallel", "parallel", "arbitrary"),
            vmem_limit_bytes=vmem_limit),
    )(x, q, k, v,
      params["wattn_t"], params["battn"],
      params["ln2_w"], params["ln2_b"],
      params["wfc_t"], params["bfc"],
      params["wmlp_t"], params["bmlp"])
    return out


# ---------------------------------------------------------------------------
# Pure-JAX f32 reference mirroring the PyTorch Block forward (eval mode).
# ---------------------------------------------------------------------------
def block_reference(x, params, n_head):
    B, T, C = x.shape
    D = C // n_head
    f32 = lambda a: a.astype(jnp.float32)

    def ln(h, w, b):
        mu = jnp.mean(h, axis=-1, keepdims=True)
        var = jnp.mean((h - mu) ** 2, axis=-1, keepdims=True)
        return (h - mu) / jnp.sqrt(var + LN_EPS) * w[0] + b[0]

    h1 = ln(x, params["ln1_w"], params["ln1_b"])
    qkv = h1 @ f32(params["wqkv_t"])
    q, k, v = jnp.split(qkv, 3, axis=-1)
    q = q.reshape(B, T, n_head, D).transpose(0, 2, 1, 3)
    k = k.reshape(B, T, n_head, D).transpose(0, 2, 1, 3)
    v = v.reshape(B, T, n_head, D).transpose(0, 2, 1, 3)
    att = jnp.einsum("bhqd,bhkd->bhqk", q, k) / math.sqrt(D)
    mask = jnp.tril(jnp.ones((T, T), dtype=bool))
    att = jnp.where(mask, att, -jnp.inf)
    att = jax.nn.softmax(att, axis=-1)
    y = jnp.einsum("bhqk,bhkd->bhqd", att, v).transpose(0, 2, 1, 3).reshape(B, T, C)
    x1 = x + y @ f32(params["wattn_t"]) + params["battn"][0]

    h2 = ln(x1, params["ln2_w"], params["ln2_b"])
    f = h2 @ f32(params["wfc_t"]) + params["bfc"][0]
    g = 0.5 * f * (1.0 + jnp.tanh(_GELU_K * (f + 0.044715 * f ** 3)))
    return x1 + g @ f32(params["wmlp_t"]) + params["bmlp"][0]


def make_params(key, n_embd):
    C, F = n_embd, 4 * n_embd
    ks = jax.random.split(key, 4)
    std = 0.02
    bf16 = jnp.bfloat16
    return {
        "ln1_w": jnp.ones((1, C), jnp.float32),
        "ln1_b": jnp.zeros((1, C), jnp.float32),
        # nn.Linear weight is (out, in); store transposed (in, out) and in bf16 for MXU.
        "wqkv_t": (jax.random.normal(ks[0], (C, 3 * C)) * std).astype(bf16),
        "wattn_t": (jax.random.normal(ks[1], (C, C)) * std).astype(bf16),
        "battn": jnp.zeros((1, C), jnp.float32),
        "ln2_w": jnp.ones((1, C), jnp.float32),
        "ln2_b": jnp.zeros((1, C), jnp.float32),
        "wfc_t": (jax.random.normal(ks[2], (C, F)) * std).astype(bf16),
        "bfc": jnp.zeros((1, F), jnp.float32),
        "wmlp_t": (jax.random.normal(ks[3], (F, C)) * std).astype(bf16),
        "bmlp": jnp.zeros((1, C), jnp.float32),
    }


if __name__ == "__main__":
    # Small GPTConfig-like shapes: n_embd=32, n_head=4, seq=8, batch=2.
    B, T, C, n_head = 2, 8, 32, 4

    key = jax.random.PRNGKey(0)
    kx, kp = jax.random.split(key)
    x = jax.random.normal(kx, (B, T, C), dtype=jnp.float32)
    params = make_params(kp, C)

    fwd = jax.jit(block_forward, static_argnums=(2,))
    out = jax.block_until_ready(fwd(x, params, n_head))
    ref = block_reference(x, params, n_head)

    assert out.shape == (B, T, C)
    max_err = float(jnp.max(jnp.abs(out - ref)))
    # bf16 MXU inputs + bf16 softmax exponent + approx reciprocal are intentional;
    # the tolerance below covers that precision choice.
    assert jnp.allclose(out, ref, atol=2e-2, rtol=2e-2), f"mismatch vs reference (max err {max_err})"

    print("KERNEL_OK")
</pallas_src>

<mosaic_0001>
module attributes {stable_mosaic.version = 11 : i64} {
  func.func @_attn_mlp_kernel(%arg0: i32, %arg1: i32, %arg2: i32, %arg3: memref<1x8x32xf32, #tpu.memory_space<vmem>>, %arg4: memref<1x4x8x8xbf16, #tpu.memory_space<vmem>>, %arg5: memref<1x4x8x8xbf16, #tpu.memory_space<vmem>>, %arg6: memref<1x4x8x8xbf16, #tpu.memory_space<vmem>>, %arg7: memref<32x32xbf16, #tpu.memory_space<vmem>>, %arg8: memref<1x32xf32, #tpu.memory_space<vmem>>, %arg9: memref<1x32xf32, #tpu.memory_space<vmem>>, %arg10: memref<1x32xf32, #tpu.memory_space<vmem>>, %arg11: memref<32x128xbf16, #tpu.memory_space<vmem>>, %arg12: memref<1x128xf32, #tpu.memory_space<vmem>>, %arg13: memref<128x32xbf16, #tpu.memory_space<vmem>>, %arg14: memref<1x32xf32, #tpu.memory_space<vmem>>, %arg15: memref<1x8x32xf32, #tpu.memory_space<vmem>>, %arg16: memref<4x8x1xf32, #tpu.memory_space<vmem>>, %arg17: memref<4x8x1xf32, #tpu.memory_space<vmem>>, %arg18: memref<4x8x8xf32, #tpu.memory_space<vmem>>, %arg19: memref<8x32xbf16, #tpu.memory_space<vmem>>) attributes {dimension_semantics = [#tpu.dimension_semantics<parallel>, #tpu.dimension_semantics<parallel>, #tpu.dimension_semantics<arbitrary>], iteration_bounds = array<i64: 2, 1, 1>, scalar_prefetch = 0 : i64, scratch_operands = 4 : i64, tpu.core_type = #tpu.core_type<tc>, window_params = [{transform_indices = @transform_0, window_bounds = array<i64: 1, 8, 32>}, {transform_indices = @transform_1, window_bounds = array<i64: 1, 4, 8, 8>}, {transform_indices = @transform_2, window_bounds = array<i64: 1, 4, 8, 8>}, {transform_indices = @transform_3, window_bounds = array<i64: 1, 4, 8, 8>}, {pipeline_mode = #tpu.pipeline_mode<synchronous>, transform_indices = @transform_4, window_bounds = array<i64: 32, 32>}, {pipeline_mode = #tpu.pipeline_mode<synchronous>, transform_indices = @transform_5, window_bounds = array<i64: 1, 32>}, {pipeline_mode = #tpu.pipeline_mode<synchronous>, transform_indices = @transform_6, window_bounds = array<i64: 1, 32>}, {pipeline_mode = #tpu.pipeline_mode<synchronous>, transform_indices = @transform_7, window_bounds = array<i64: 1, 32>}, {pipeline_mode = #tpu.pipeline_mode<synchronous>, transform_indices = @transform_8, window_bounds = array<i64: 32, 128>}, {pipeline_mode = #tpu.pipeline_mode<synchronous>, transform_indices = @transform_9, window_bounds = array<i64: 1, 128>}, {pipeline_mode = #tpu.pipeline_mode<synchronous>, transform_indices = @transform_10, window_bounds = array<i64: 128, 32>}, {pipeline_mode = #tpu.pipeline_mode<synchronous>, transform_indices = @transform_11, window_bounds = array<i64: 1, 32>}, {transform_indices = @transform_12, window_bounds = array<i64: 1, 8, 32>}]} {
    %c1_i32 = arith.constant 1 : i32
    %0 = arith.addi %arg1, %c1_i32 : i32
    %c1_i32_0 = arith.constant 1 : i32
    %1 = arith.muli %0, %c1_i32_0 : i32
    %c1_i32_1 = arith.constant 1 : i32
    %2 = arith.subi %1, %c1_i32_1 : i32
    %c0_i32 = arith.constant 0 : i32
    %3 = arith.cmpi eq, %arg2, %c0_i32 : i32
    %4 = arith.extui %3 : i1 to i32
    %c0_i32_2 = arith.constant 0 : i32
    %5 = arith.cmpi ne, %4, %c0_i32_2 : i32
    scf.if %5 {
      %cst = arith.constant -1.000000e+30 : f32
      %19 = vector.broadcast %cst : f32 to vector<4x8x1xf32>
      %c0 = arith.constant 0 : index
      %c0_8 = arith.constant 0 : index
      %c0_9 = arith.constant 0 : index
      %20 = vector.load %arg16[%c0, %c0_8, %c0_9] : memref<4x8x1xf32, #tpu.memory_space<vmem>>, vector<4x8x1xf32>
      tpu.vector_store %arg16[%c0, %c0_8, %c0_9], %19 {strides = array<i32>} : memref<4x8x1xf32, #tpu.memory_space<vmem>>, vector<4x8x1xf32>,
      %cst_10 = arith.constant 0.000000e+00 : f32
      %21 = vector.broadcast %cst_10 : f32 to vector<4x8x1xf32>
      %c0_11 = arith.constant 0 : index
      %c0_12 = arith.constant 0 : index
      %c0_13 = arith.constant 0 : index
      %22 = vector.load %arg17[%c0_11, %c0_12, %c0_13] : memref<4x8x1xf32, #tpu.memory_space<vmem>>, vector<4x8x1xf32>
      tpu.vector_store %arg17[%c0_11, %c0_12, %c0_13], %21 {strides = array<i32>} : memref<4x8x1xf32, #tpu.memory_space<vmem>>, vector<4x8x1xf32>,
      %cst_14 = arith.constant 0.000000e+00 : f32
      %23 = vector.broadcast %cst_14 : f32 to vector<4x8x8xf32>
      %c0_15 = arith.constant 0 : index
      %c0_16 = arith.constant 0 : index
      %c0_17 = arith.constant 0 : index
      %24 = vector.load %arg18[%c0_15, %c0_16, %c0_17] : memref<4x8x8xf32, #tpu.memory_space<vmem>>, vector<4x8x8xf32>
      tpu.vector_store %arg18[%c0_15, %c0_16, %c0_17], %23 {strides = array<i32>} : memref<4x8x8xf32, #tpu.memory_space<vmem>>, vector<4x8x8xf32>,
    } else {
    }
    %c1_i32_3 = arith.constant 1 : i32
    %6 = arith.muli %arg1, %c1_i32_3 : i32
    %7 = arith.cmpi slt, %arg2, %6 : i32
    %8 = arith.extui %7 : i1 to i32
    %c0_i32_4 = arith.constant 0 : i32
    %9 = arith.cmpi ne, %8, %c0_i32_4 : i32
    scf.if %9 {
      %c0 = arith.constant 0 : index
      %c0_8 = arith.constant 0 : index
      %c0_9 = arith.constant 0 : index
      %c0_10 = arith.constant 0 : index
      %19 = vector.load %arg4[%c0, %c0_8, %c0_9, %c0_10] : memref<1x4x8x8xbf16, #tpu.memory_space<vmem>>, vector<1x4x8x8xbf16>
      %20 = vector.shape_cast %19 : vector<1x4x8x8xbf16> to vector<4x8x8xbf16>
      %c0_11 = arith.constant 0 : index
      %c0_12 = arith.constant 0 : index
      %c0_13 = arith.constant 0 : index
      %c0_14 = arith.constant 0 : index
      %21 = vector.load %arg5[%c0_11, %c0_12, %c0_13, %c0_14] : memref<1x4x8x8xbf16, #tpu.memory_space<vmem>>, vector<1x4x8x8xbf16>
      %22 = vector.shape_cast %21 : vector<1x4x8x8xbf16> to vector<4x8x8xbf16>
      %c0_15 = arith.constant 0 : index
      %c0_16 = arith.constant 0 : index
      %c0_17 = arith.constant 0 : index
      %c0_18 = arith.constant 0 : index
      %23 = vector.load %arg6[%c0_15, %c0_16, %c0_17, %c0_18] : memref<1x4x8x8xbf16, #tpu.memory_space<vmem>>, vector<1x4x8x8xbf16>
      %24 = vector.shape_cast %23 : vector<1x4x8x8xbf16> to vector<4x8x8xbf16>
      "tpu.trace_start"() <{level = 10 : i32, message = "hqd,hdk->hqk"}> : () -> ()
      %cst = arith.constant dense<0.000000e+00> : vector<4x8x8xf32>
      %25 = tpu.matmul %20, %22, %cst {dimension_numbers = #tpu.dot_dimension_numbers<[2], [1], [1], [2], [0, 0, 0, 1, 1, 2], [0], [0]>} : vector<4x8x8xbf16>, vector<4x8x8xbf16>, vector<4x8x8xf32> -> vector<4x8x8xf32>
      "tpu.trace_stop"() : () -> ()
      %c0_19 = arith.constant 0 : index
      %c0_20 = arith.constant 0 : index
      %c0_21 = arith.constant 0 : index
      %26 = vector.load %arg16[%c0_19, %c0_20, %c0_21] : memref<4x8x1xf32, #tpu.memory_space<vmem>>, vector<4x8x1xf32>
      %cst_22 = arith.constant dense<0xFF800000> : vector<4x8xf32>
      %27 = vector.multi_reduction <maximumf>, %25, %cst_22 [2] : vector<4x8x8xf32> to vector<4x8xf32>
      %28 = vector.shape_cast %27 : vector<4x8xf32> to vector<4x8x1xf32>
      %29 = arith.maximumf %26, %28 : vector<4x8x1xf32>
      %30 = arith.subf %26, %29 : vector<4x8x1xf32>
      %31 = math.exp %30 : vector<4x8x1xf32>
      %32 = vector.broadcast %29 : vector<4x8x1xf32> to vector<4x8x8xf32>
      %33 = arith.subf %25, %32 : vector<4x8x8xf32>
      %34 = arith.truncf %33 : vector<4x8x8xf32> to vector<4x8x8xbf16>
      %35 = math.exp %34 : vector<4x8x8xbf16>
      %c0_23 = arith.constant 0 : index
      %c0_24 = arith.constant 0 : index
      %c0_25 = arith.constant 0 : index
      %36 = vector.load %arg17[%c0_23, %c0_24, %c0_25] : memref<4x8x1xf32, #tpu.memory_space<vmem>>, vector<4x8x1xf32>
      %37 = arith.mulf %31, %36 : vector<4x8x1xf32>
      %38 = arith.extf %35 : vector<4x8x8xbf16> to vector<4x8x8xf32>
      %cst_26 = arith.constant dense<0.000000e+00> : vector<4x8xf32>
      %39 = vector.multi_reduction <add>, %38, %cst_26 [2] : vector<4x8x8xf32> to vector<4x8xf32>
      %40 = vector.shape_cast %39 : vector<4x8xf32> to vector<4x8x1xf32>
      %41 = arith.addf %37, %40 : vector<4x8x1xf32>
      %c0_27 = arith.constant 0 : index
      %c0_28 = arith.constant 0 : index
      %c0_29 = arith.constant 0 : index
      %42 = vector.load %arg17[%c0_27, %c0_28, %c0_29] : memref<4x8x1xf32, #tpu.memory_space<vmem>>, vector<4x8x1xf32>
      tpu.vector_store %arg17[%c0_27, %c0_28, %c0_29], %41 {strides = array<i32>} : memref<4x8x1xf32, #tpu.memory_space<vmem>>, vector<4x8x1xf32>,
      %c0_30 = arith.constant 0 : index
      %c0_31 = arith.constant 0 : index
      %c0_32 = arith.constant 0 : index
      %43 = vector.load %arg18[%c0_30, %c0_31, %c0_32] : memref<4x8x8xf32, #tpu.memory_space<vmem>>, vector<4x8x8xf32>
      %44 = vector.broadcast %31 : vector<4x8x1xf32> to vector<4x8x8xf32>
      %45 = arith.mulf %44, %43 : vector<4x8x8xf32>
      "tpu.trace_start"() <{level = 10 : i32, message = "hqk,hkd->hqd"}> : () -> ()
      %cst_33 = arith.constant dense<0.000000e+00> : vector<4x8x8xf32>
      %46 = tpu.matmul %35, %24, %cst_33 {dimension_numbers = #tpu.dot_dimension_numbers<[2], [1], [1], [2], [0, 0, 0, 1, 1, 2], [0], [0]>} : vector<4x8x8xbf16>, vector<4x8x8xbf16>, vector<4x8x8xf32> -> vector<4x8x8xf32>
      "tpu.trace_stop"() : () -> ()
      %47 = arith.addf %45, %46 : vector<4x8x8xf32>
      %c0_34 = arith.constant 0 : index
      %c0_35 = arith.constant 0 : index
      %c0_36 = arith.constant 0 : index
      %48 = vector.load %arg18[%c0_34, %c0_35, %c0_36] : memref<4x8x8xf32, #tpu.memory_space<vmem>>, vector<4x8x8xf32>
      tpu.vector_store %arg18[%c0_34, %c0_35, %c0_36], %47 {strides = array<i32>} : memref<4x8x8xf32, #tpu.memory_space<vmem>>, vector<4x8x8xf32>,
      %c0_37 = arith.constant 0 : index
      %c0_38 = arith.constant 0 : index
      %c0_39 = arith.constant 0 : index
      %49 = vector.load %arg16[%c0_37, %c0_38, %c0_39] : memref<4x8x1xf32, #tpu.memory_space<vmem>>, vector<4x8x1xf32>
      tpu.vector_store %arg16[%c0_37, %c0_38, %c0_39], %29 {strides = array<i32>} : memref<4x8x1xf32, #tpu.memory_space<vmem>>, vector<4x8x1xf32>,
    } else {
    }
    %c1_i32_5 = arith.constant 1 : i32
    %10 = arith.muli %arg1, %c1_i32_5 : i32
    %11 = arith.cmpi sge, %arg2, %10 : i32
    %12 = arith.cmpi sle, %arg2, %2 : i32
    %13 = arith.andi %11, %12 : i1
    %14 = arith.extui %13 : i1 to i32
    %c0_i32_6 = arith.constant 0 : i32
    %15 = arith.cmpi ne, %14, %c0_i32_6 : i32
    scf.if %15 {
      %c0 = arith.constant 0 : index
      %c0_8 = arith.constant 0 : index
      %c0_9 = arith.constant 0 : index
      %c0_10 = arith.constant 0 : index
      %19 = vector.load %arg4[%c0, %c0_8, %c0_9, %c0_10] : memref<1x4x8x8xbf16, #tpu.memory_space<vmem>>, vector<1x4x8x8xbf16>
      %20 = vector.shape_cast %19 : vector<1x4x8x8xbf16> to vector<4x8x8xbf16>
      %c0_11 = arith.constant 0 : index
      %c0_12 = arith.constant 0 : index
      %c0_13 = arith.constant 0 : index
      %c0_14 = arith.constant 0 : index
      %21 = vector.load %arg5[%c0_11, %c0_12, %c0_13, %c0_14] : memref<1x4x8x8xbf16, #tpu.memory_space<vmem>>, vector<1x4x8x8xbf16>
      %22 = vector.shape_cast %21 : vector<1x4x8x8xbf16> to vector<4x8x8xbf16>
      %c0_15 = arith.constant 0 : index
      %c0_16 = arith.constant 0 : index
      %c0_17 = arith.constant 0 : index
      %c0_18 = arith.constant 0 : index
      %23 = vector.load %arg6[%c0_15, %c0_16, %c0_17, %c0_18] : memref<1x4x8x8xbf16, #tpu.memory_space<vmem>>, vector<1x4x8x8xbf16>
      %24 = vector.shape_cast %23 : vector<1x4x8x8xbf16> to vector<4x8x8xbf16>
      "tpu.trace_start"() <{level = 10 : i32, message = "hqd,hdk->hqk"}> : () -> ()
      %cst = arith.constant dense<0.000000e+00> : vector<4x8x8xf32>
      %25 = tpu.matmul %20, %22, %cst {dimension_numbers = #tpu.dot_dimension_numbers<[2], [1], [1], [2], [0, 0, 0, 1, 1, 2], [0], [0]>} : vector<4x8x8xbf16>, vector<4x8x8xbf16>, vector<4x8x8xf32> -> vector<4x8x8xf32>
      "tpu.trace_stop"() : () -> ()
      %26 = tpu.iota {dimensions = array<i32: 0>} : vector<8x8xi32>
      %27 = tpu.iota {dimensions = array<i32: 1>} : vector<8x8xi32>
      %c8_i32 = arith.constant 8 : i32
      %28 = arith.muli %arg1, %c8_i32 : i32
      %29 = vector.broadcast %28 : i32 to vector<8x8xi32>
      %30 = arith.addi %29, %26 : vector<8x8xi32>
      %c8_i32_19 = arith.constant 8 : i32
      %31 = arith.muli %arg2, %c8_i32_19 : i32
      %32 = vector.broadcast %31 : i32 to vector<8x8xi32>
      %33 = arith.addi %32, %27 : vector<8x8xi32>
      %34 = arith.cmpi sge, %30, %33 : vector<8x8xi32>
      %cst_20 = arith.constant -1.000000e+30 : f32
      %35 = vector.shape_cast %34 : vector<8x8xi1> to vector<1x8x8xi1>
      %36 = vector.broadcast %35 : vector<1x8x8xi1> to vector<4x8x8xi1>
      %37 = vector.broadcast %cst_20 : f32 to vector<4x8x8xf32>
      %38 = arith.select %36, %25, %37 : vector<4x8x8xi1>, vector<4x8x8xf32>
      %c0_21 = arith.constant 0 : index
      %c0_22 = arith.constant 0 : index
      %c0_23 = arith.constant 0 : index
      %39 = vector.load %arg16[%c0_21, %c0_22, %c0_23] : memref<4x8x1xf32, #tpu.memory_space<vmem>>, vector<4x8x1xf32>
      %cst_24 = arith.constant dense<0xFF800000> : vector<4x8xf32>
      %40 = vector.multi_reduction <maximumf>, %38, %cst_24 [2] : vector<4x8x8xf32> to vector<4x8xf32>
      %41 = vector.shape_cast %40 : vector<4x8xf32> to vector<4x8x1xf32>
      %42 = arith.maximumf %39, %41 : vector<4x8x1xf32>
      %43 = arith.subf %39, %42 : vector<4x8x1xf32>
      %44 = math.exp %43 : vector<4x8x1xf32>
      %45 = vector.broadcast %42 : vector<4x8x1xf32> to vector<4x8x8xf32>
      %46 = arith.subf %38, %45 : vector<4x8x8xf32>
      %47 = arith.truncf %46 : vector<4x8x8xf32> to vector<4x8x8xbf16>
      %48 = math.exp %47 : vector<4x8x8xbf16>
      %c0_25 = arith.constant 0 : index
      %c0_26 = arith.constant 0 : index
      %c0_27 = arith.constant 0 : index
      %49 = vector.load %arg17[%c0_25, %c0_26, %c0_27] : memref<4x8x1xf32, #tpu.memory_space<vmem>>, vector<4x8x1xf32>
      %50 = arith.mulf %44, %49 : vector<4x8x1xf32>
      %51 = arith.extf %48 : vector<4x8x8xbf16> to vector<4x8x8xf32>
      %cst_28 = arith.constant dense<0.000000e+00> : vector<4x8xf32>
      %52 = vector.multi_reduction <add>, %51, %cst_28 [2] : vector<4x8x8xf32> to vector<4x8xf32>
      %53 = vector.shape_cast %52 : vector<4x8xf32> to vector<4x8x1xf32>
      %54 = arith.addf %50, %53 : vector<4x8x1xf32>
      %c0_29 = arith.constant 0 : index
      %c0_30 = arith.constant 0 : index
      %c0_31 = arith.constant 0 : index
      %55 = vector.load %arg17[%c0_29, %c0_30, %c0_31] : memref<4x8x1xf32, #tpu.memory_space<vmem>>, vector<4x8x1xf32>
      tpu.vector_store %arg17[%c0_29, %c0_30, %c0_31], %54 {strides = array<i32>} : memref<4x8x1xf32, #tpu.memory_space<vmem>>, vector<4x8x1xf32>,
      %c0_32 = arith.constant 0 : index
      %c0_33 = arith.constant 0 : index
      %c0_34 = arith.constant 0 : index
      %56 = vector.load %arg18[%c0_32, %c0_33, %c0_34] : memref<4x8x8xf32, #tpu.memory_space<vmem>>, vector<4x8x8xf32>
      %57 = vector.broadcast %44 : vector<4x8x1xf32> to vector<4x8x8xf32>
      %58 = arith.mulf %57, %56 : vector<4x8x8xf32>
      "tpu.trace_start"() <{level = 10 : i32, message = "hqk,hkd->hqd"}> : () -> ()
      %cst_35 = arith.constant dense<0.000000e+00> : vector<4x8x8xf32>
      %59 = tpu.matmul %48, %24, %cst_35 {dimension_numbers = #tpu.dot_dimension_numbers<[2], [1], [1], [2], [0, 0, 0, 1, 1, 2], [0], [0]>} : vector<4x8x8xbf16>, vector<4x8x8xbf16>, vector<4x8x8xf32> -> vector<4x8x8xf32>
      "tpu.trace_stop"() : () -> ()
      %60 = arith.addf %58, %59 : vector<4x8x8xf32>
      %c0_36 = arith.constant 0 : index
      %c0_37 = arith.constant 0 : index
      %c0_38 = arith.constant 0 : index
      %61 = vector.load %arg18[%c0_36, %c0_37, %c0_38] : memref<4x8x8xf32, #tpu.memory_space<vmem>>, vector<4x8x8xf32>
      tpu.vector_store %arg18[%c0_36, %c0_37, %c0_38], %60 {strides = array<i32>} : memref<4x8x8xf32, #tpu.memory_space<vmem>>, vector<4x8x8xf32>,
      %c0_39 = arith.constant 0 : index
      %c0_40 = arith.constant 0 : index
      %c0_41 = arith.constant 0 : index
      %62 = vector.load %arg16[%c0_39, %c0_40, %c0_41] : memref<4x8x1xf32, #tpu.memory_space<vmem>>, vector<4x8x1xf32>
      tpu.vector_store %arg16[%c0_39, %c0_40, %c0_41], %42 {strides = array<i32>} : memref<4x8x1xf32, #tpu.memory_space<vmem>>, vector<4x8x1xf32>,
    } else {
    }
    %16 = arith.cmpi eq, %arg2, %2 : i32
    %17 = arith.extui %16 : i1 to i32
    %c0_i32_7 = arith.constant 0 : i32
    %18 = arith.cmpi ne, %17, %c0_i32_7 : i32
    scf.if %18 {
      %c0 = arith.constant 0 : index
      %c0_8 = arith.constant 0 : index
      %c0_9 = arith.constant 0 : index
      %19 = vector.load %arg3[%c0, %c0_8, %c0_9] : memref<1x8x32xf32, #tpu.memory_space<vmem>>, vector<1x8x32xf32>
      %20 = vector.shape_cast %19 : vector<1x8x32xf32> to vector<8x32xf32>
      %c0_10 = arith.constant 0 : index
      %c0_11 = arith.constant 0 : index
      %c0_12 = arith.constant 0 : index
      %21 = vector.load %arg17[%c0_10, %c0_11, %c0_12] : memref<4x8x1xf32, #tpu.memory_space<vmem>>, vector<4x8x1xf32>
      %22 = tpu.reciprocal %21 {approx = true} : vector<4x8x1xf32> -> vector<4x8x1xf32>
      %c0_13 = arith.constant 0 : index
      %c0_14 = arith.constant 0 : index
      %c0_15 = arith.constant 0 : index
      %23 = vector.load %arg18[%c0_13, %c0_14, %c0_15] : memref<4x8x8xf32, #tpu.memory_space<vmem>>, vector<1x8x8xf32>
      %24 = vector.shape_cast %23 : vector<1x8x8xf32> to vector<8x8xf32>
      %25 = vector.extract_strided_slice %22 {offsets = [0, 0, 0], sizes = [1, 8, 1], strides = [1, 1, 1]} : vector<4x8x1xf32> to vector<1x8x1xf32>
      %26 = vector.shape_cast %25 : vector<1x8x1xf32> to vector<8x1xf32>
      %27 = vector.broadcast %26 : vector<8x1xf32> to vector<8x8xf32>
      %28 = arith.mulf %24, %27 : vector<8x8xf32>
      %29 = arith.truncf %28 : vector<8x8xf32> to vector<8x8xbf16>
      %c0_16 = arith.constant 0 : index
      %c0_17 = arith.constant 0 : index
      %30 = vector.load %arg19[%c0_16, %c0_17] : memref<8x32xbf16, #tpu.memory_space<vmem>>, vector<8x8xbf16>
      tpu.vector_store %arg19[%c0_16, %c0_17], %29 {strides = array<i32>} : memref<8x32xbf16, #tpu.memory_space<vmem>>, vector<8x8xbf16>,
      %c1 = arith.constant 1 : index
      %c0_18 = arith.constant 0 : index
      %c0_19 = arith.constant 0 : index
      %31 = vector.load %arg18[%c1, %c0_18, %c0_19] : memref<4x8x8xf32, #tpu.memory_space<vmem>>, vector<1x8x8xf32>
      %32 = vector.shape_cast %31 : vector<1x8x8xf32> to vector<8x8xf32>
      %33 = vector.extract_strided_slice %22 {offsets = [1, 0, 0], sizes = [1, 8, 1], strides = [1, 1, 1]} : vector<4x8x1xf32> to vector<1x8x1xf32>
      %34 = vector.shape_cast %33 : vector<1x8x1xf32> to vector<8x1xf32>
      %35 = vector.broadcast %34 : vector<8x1xf32> to vector<8x8xf32>
      %36 = arith.mulf %32, %35 : vector<8x8xf32>
      %37 = arith.truncf %36 : vector<8x8xf32> to vector<8x8xbf16>
      %c0_20 = arith.constant 0 : index
      %c8 = arith.constant 8 : index
      %38 = vector.load %arg19[%c0_20, %c8] : memref<8x32xbf16, #tpu.memory_space<vmem>>, vector<8x8xbf16>
      tpu.vector_store %arg19[%c0_20, %c8], %37 {strides = array<i32>} : memref<8x32xbf16, #tpu.memory_space<vmem>>, vector<8x8xbf16>,
      %c2 = arith.constant 2 : index
      %c0_21 = arith.constant 0 : index
      %c0_22 = arith.constant 0 : index
      %39 = vector.load %arg18[%c2, %c0_21, %c0_22] : memref<4x8x8xf32, #tpu.memory_space<vmem>>, vector<1x8x8xf32>
      %40 = vector.shape_cast %39 : vector<1x8x8xf32> to vector<8x8xf32>
      %41 = vector.extract_strided_slice %22 {offsets = [2, 0, 0], sizes = [1, 8, 1], strides = [1, 1, 1]} : vector<4x8x1xf32> to vector<1x8x1xf32>
      %42 = vector.shape_cast %41 : vector<1x8x1xf32> to vector<8x1xf32>
      %43 = vector.broadcast %42 : vector<8x1xf32> to vector<8x8xf32>
      %44 = arith.mulf %40, %43 : vector<8x8xf32>
      %45 = arith.truncf %44 : vector<8x8xf32> to vector<8x8xbf16>
      %c0_23 = arith.constant 0 : index
      %c16 = arith.constant 16 : index
      %46 = vector.load %arg19[%c0_23, %c16] : memref<8x32xbf16, #tpu.memory_space<vmem>>, vector<8x8xbf16>
      tpu.vector_store %arg19[%c0_23, %c16], %45 {strides = array<i32>} : memref<8x32xbf16, #tpu.memory_space<vmem>>, vector<8x8xbf16>,
      %c3 = arith.constant 3 : index
      %c0_24 = arith.constant 0 : index
      %c0_25 = arith.constant 0 : index
      %47 = vector.load %arg18[%c3, %c0_24, %c0_25] : memref<4x8x8xf32, #tpu.memory_space<vmem>>, vector<1x8x8xf32>
      %48 = vector.shape_cast %47 : vector<1x8x8xf32> to vector<8x8xf32>
      %49 = vector.extract_strided_slice %22 {offsets = [3, 0, 0], sizes = [1, 8, 1], strides = [1, 1, 1]} : vector<4x8x1xf32> to vector<1x8x1xf32>
      %50 = vector.shape_cast %49 : vector<1x8x1xf32> to vector<8x1xf32>
      %51 = vector.broadcast %50 : vector<8x1xf32> to vector<8x8xf32>
      %52 = arith.mulf %48, %51 : vector<8x8xf32>
      %53 = arith.truncf %52 : vector<8x8xf32> to vector<8x8xbf16>
      %c0_26 = arith.constant 0 : index
      %c24 = arith.constant 24 : index
      %54 = vector.load %arg19[%c0_26, %c24] : memref<8x32xbf16, #tpu.memory_space<vmem>>, vector<8x8xbf16>
      tpu.vector_store %arg19[%c0_26, %c24], %53 {strides = array<i32>} : memref<8x32xbf16, #tpu.memory_space<vmem>>, vector<8x8xbf16>,
      %c0_27 = arith.constant 0 : index
      %c0_28 = arith.constant 0 : index
      %55 = vector.load %arg19[%c0_27, %c0_28] : memref<8x32xbf16, #tpu.memory_space<vmem>>, vector<8x32xbf16>
      %c0_29 = arith.constant 0 : index
      %c0_30 = arith.constant 0 : index
      %56 = vector.load %arg7[%c0_29, %c0_30] : memref<32x32xbf16, #tpu.memory_space<vmem>>, vector<32x32xbf16>
      %cst = arith.constant dense<0.000000e+00> : vector<8x32xf32>
      %57 = tpu.matmul %55, %56, %cst {dimension_numbers = #tpu.dot_dimension_numbers<[1], [0], [0], [1], [0, 0, 1, 1], [], []>} : vector<8x32xbf16>, vector<32x32xbf16>, vector<8x32xf32> -> vector<8x32xf32>
      %c0_31 = arith.constant 0 : index
      %c0_32 = arith.constant 0 : index
      %58 = vector.load %arg8[%c0_31, %c0_32] : memref<1x32xf32, #tpu.memory_space<vmem>>, vector<1x32xf32>
      %59 = vector.broadcast %58 : vector<1x32xf32> to vector<8x32xf32>
      %60 = arith.addf %57, %59 : vector<8x32xf32>
      %61 = arith.addf %20, %60 : vector<8x32xf32>
      %c0_33 = arith.constant 0 : index
      %c0_34 = arith.constant 0 : index
      %62 = vector.load %arg9[%c0_33, %c0_34] : memref<1x32xf32, #tpu.memory_space<vmem>>, vector<1x32xf32>
      %c0_35 = arith.constant 0 : index
      %c0_36 = arith.constant 0 : index
      %63 = vector.load %arg10[%c0_35, %c0_36] : memref<1x32xf32, #tpu.memory_space<vmem>>, vector<1x32xf32>
      %cst_37 = arith.constant dense<0.000000e+00> : vector<8xf32>
      %64 = vector.multi_reduction <add>, %61, %cst_37 [1] : vector<8x32xf32> to vector<8xf32>
      %65 = vector.shape_cast %64 : vector<8xf32> to vector<8x1xf32>
      %cst_38 = arith.constant 3.200000e+01 : f32
      %66 = vector.broadcast %cst_38 : f32 to vector<8x1xf32>
      %67 = arith.divf %65, %66 : vector<8x1xf32>
      %68 = vector.broadcast %67 : vector<8x1xf32> to vector<8x32xf32>
      %69 = arith.subf %61, %68 : vector<8x32xf32>
      %70 = arith.mulf %69, %69 : vector<8x32xf32>
      %cst_39 = arith.constant dense<0.000000e+00> : vector<8xf32>
      %71 = vector.multi_reduction <add>, %70, %cst_39 [1] : vector<8x32xf32> to vector<8xf32>
      %72 = vector.shape_cast %71 : vector<8xf32> to vector<8x1xf32>
      %cst_40 = arith.constant 3.200000e+01 : f32
      %73 = vector.broadcast %cst_40 : f32 to vector<8x1xf32>
      %74 = arith.divf %72, %73 : vector<8x1xf32>
      %75 = vector.broadcast %67 : vector<8x1xf32> to vector<8x32xf32>
      %76 = arith.subf %61, %75 : vector<8x32xf32>
      %cst_41 = arith.constant 9.99999974E-6 : f32
      %77 = vector.broadcast %cst_41 : f32 to vector<8x1xf32>
      %78 = arith.addf %74, %77 : vector<8x1xf32>
      %79 = math.rsqrt %78 : vector<8x1xf32>
      %80 = vector.broadcast %79 : vector<8x1xf32> to vector<8x32xf32>
      %81 = arith.mulf %76, %80 : vector<8x32xf32>
      %82 = vector.broadcast %62 : vector<1x32xf32> to vector<8x32xf32>
      %83 = arith.mulf %81, %82 : vector<8x32xf32>
      %84 = vector.broadcast %63 : vector<1x32xf32> to vector<8x32xf32>
      %85 = arith.addf %83, %84 : vector<8x32xf32>
      %86 = arith.truncf %85 : vector<8x32xf32> to vector<8x32xbf16>
      %c0_42 = arith.constant 0 : index
      %c0_43 = arith.constant 0 : index
      %87 = vector.load %arg11[%c0_42, %c0_43] : memref<32x128xbf16, #tpu.memory_space<vmem>>, vector<32x128xbf16>
      %cst_44 = arith.constant dense<0.000000e+00> : vector<8x128xf32>
      %88 = tpu.matmul %86, %87, %cst_44 {dimension_numbers = #tpu.dot_dimension_numbers<[1], [0], [0], [1], [0, 0, 1, 1], [], []>} : vector<8x32xbf16>, vector<32x128xbf16>, vector<8x128xf32> -> vector<8x128xf32>
      %c0_45 = arith.constant 0 : index
      %c0_46 = arith.constant 0 : index
      %89 = vector.load %arg12[%c0_45, %c0_46] : memref<1x128xf32, #tpu.memory_space<vmem>>, vector<1x128xf32>
      %90 = vector.broadcast %89 : vector<1x128xf32> to vector<8x128xf32>
      %91 = arith.addf %88, %90 : vector<8x128xf32>
      %cst_47 = arith.constant 5.000000e-01 : f32
      %92 = vector.broadcast %cst_47 : f32 to vector<8x128xf32>
      %93 = arith.mulf %92, %91 : vector<8x128xf32>
      %cst_48 = arith.constant 4.471500e-02 : f32
      %94 = vector.broadcast %cst_48 : f32 to vector<8x128xf32>
      %95 = arith.mulf %94, %91 : vector<8x128xf32>
      %96 = arith.mulf %95, %91 : vector<8x128xf32>
      %97 = arith.mulf %96, %91 : vector<8x128xf32>
      %98 = arith.addf %91, %97 : vector<8x128xf32>
      %cst_49 = arith.constant 0.797884583 : f32
      %99 = vector.broadcast %cst_49 : f32 to vector<8x128xf32>
      %100 = arith.mulf %99, %98 : vector<8x128xf32>
      %101 = math.tanh %100 : vector<8x128xf32>
      %cst_50 = arith.constant 1.000000e+00 : f32
      %102 = vector.broadcast %cst_50 : f32 to vector<8x128xf32>
      %103 = arith.addf %102, %101 : vector<8x128xf32>
      %104 = arith.mulf %93, %103 : vector<8x128xf32>
      %105 = arith.truncf %104 : vector<8x128xf32> to vector<8x128xbf16>
      %c0_51 = arith.constant 0 : index
      %c0_52 = arith.constant 0 : index
      %106 = vector.load %arg13[%c0_51, %c0_52] : memref<128x32xbf16, #tpu.memory_space<vmem>>, vector<128x32xbf16>
      %cst_53 = arith.constant dense<0.000000e+00> : vector<8x32xf32>
      %107 = tpu.matmul %105, %106, %cst_53 {dimension_numbers = #tpu.dot_dimension_numbers<[1], [0], [0], [1], [0, 0, 1, 1], [], []>} : vector<8x128xbf16>, vector<128x32xbf16>, vector<8x32xf32> -> vector<8x32xf32>
      %c0_54 = arith.constant 0 : index
      %c0_55 = arith.constant 0 : index
      %108 = vector.load %arg14[%c0_54, %c0_55] : memref<1x32xf32, #tpu.memory_space<vmem>>, vector<1x32xf32>
      %109 = vector.broadcast %108 : vector<1x32xf32> to vector<8x32xf32>
      %110 = arith.addf %107, %109 : vector<8x32xf32>
      %111 = arith.addf %61, %110 : vector<8x32xf32>
      %c0_56 = arith.constant 0 : index
      %c0_57 = arith.constant 0 : index
      %c0_58 = arith.constant 0 : index
      %112 = vector.load %arg15[%c0_56, %c0_57, %c0_58] : memref<1x8x32xf32, #tpu.memory_space<vmem>>, vector<1x8x32xf32>
      %113 = vector.shape_cast %112 : vector<1x8x32xf32> to vector<8x32xf32>
      %114 = vector.shape_cast %111 : vector<8x32xf32> to vector<1x8x32xf32>
      tpu.vector_store %arg15[%c0_56, %c0_57, %c0_58], %114 {strides = array<i32>} : memref<1x8x32xf32, #tpu.memory_space<vmem>>, vector<1x8x32xf32>,
    } else {
    }
    return
  }
  func.func @transform_0(%arg0: i32, %arg1: i32, %arg2: i32) -> (i32, i32, i32) {
    %c0_i32 = arith.constant 0 : i32
    %c0_i32_0 = arith.constant 0 : i32
    return %arg0, %arg1, %c0_i32 : i32, i32, i32
  }
  func.func @transform_1(%arg0: i32, %arg1: i32, %arg2: i32) -> (i32, i32, i32, i32) {
    %c0_i32 = arith.constant 0 : i32
    %c0_i32_0 = arith.constant 0 : i32
    %c0_i32_1 = arith.constant 0 : i32
    return %arg0, %c0_i32, %arg1, %c0_i32_0 : i32, i32, i32, i32
  }
  func.func @transform_2(%arg0: i32, %arg1: i32, %arg2: i32) -> (i32, i32, i32, i32) {
    %c1_i32 = arith.constant 1 : i32
    %0 = arith.addi %arg1, %c1_i32 : i32
    %c1_i32_0 = arith.constant 1 : i32
    %1 = arith.muli %0, %c1_i32_0 : i32
    %c1_i32_1 = arith.constant 1 : i32
    %2 = arith.subi %1, %c1_i32_1 : i32
    %3 = arith.minsi %arg2, %2 : i32
    %c0_i32 = arith.constant 0 : i32
    %c0_i32_2 = arith.constant 0 : i32
    %c0_i32_3 = arith.constant 0 : i32
    return %arg0, %c0_i32, %c0_i32_2, %3 : i32, i32, i32, i32
  }
  func.func @transform_3(%arg0: i32, %arg1: i32, %arg2: i32) -> (i32, i32, i32, i32) {
    %c1_i32 = arith.constant 1 : i32
    %0 = arith.addi %arg1, %c1_i32 : i32
    %c1_i32_0 = arith.constant 1 : i32
    %1 = arith.muli %0, %c1_i32_0 : i32
    %c1_i32_1 = arith.constant 1 : i32
    %2 = arith.subi %1, %c1_i32_1 : i32
    %3 = arith.minsi %arg2, %2 : i32
    %c0_i32 = arith.constant 0 : i32
    %c0_i32_2 = arith.constant 0 : i32
    %c0_i32_3 = arith.constant 0 : i32
    return %arg0, %c0_i32, %3, %c0_i32_2 : i32, i32, i32, i32
  }
  func.func @transform_4(%arg0: i32, %arg1: i32, %arg2: i32) -> (i32, i32) {
    %c0_i32 = arith.constant 0 : i32
    %c0_i32_0 = arith.constant 0 : i32
    %c0_i32_1 = arith.constant 0 : i32
    return %c0_i32, %c0_i32_0 : i32, i32
  }
  func.func @transform_5(%arg0: i32, %arg1: i32, %arg2: i32) -> (i32, i32) {
    %c0_i32 = arith.constant 0 : i32
    %c0_i32_0 = arith.constant 0 : i32
    %c0_i32_1 = arith.constant 0 : i32
    return %c0_i32, %c0_i32_0 : i32, i32
  }
  func.func @transform_6(%arg0: i32, %arg1: i32, %arg2: i32) -> (i32, i32) {
    %c0_i32 = arith.constant 0 : i32
    %c0_i32_0 = arith.constant 0 : i32
    %c0_i32_1 = arith.constant 0 : i32
    return %c0_i32, %c0_i32_0 : i32, i32
  }
  func.func @transform_7(%arg0: i32, %arg1: i32, %arg2: i32) -> (i32, i32) {
    %c0_i32 = arith.constant 0 : i32
    %c0_i32_0 = arith.constant 0 : i32
    %c0_i32_1 = arith.constant 0 : i32
    return %c0_i32, %c0_i32_0 : i32, i32
  }
  func.func @transform_8(%arg0: i32, %arg1: i32, %arg2: i32) -> (i32, i32) {
    %c0_i32 = arith.constant 0 : i32
    %c0_i32_0 = arith.constant 0 : i32
    %c0_i32_1 = arith.constant 0 : i32
    return %c0_i32, %c0_i32_0 : i32, i32
  }
  func.func @transform_9(%arg0: i32, %arg1: i32, %arg2: i32) -> (i32, i32) {
    %c0_i32 = arith.constant 0 : i32
    %c0_i32_0 = arith.constant 0 : i32
    %c0_i32_1 = arith.constant 0 : i32
    return %c0_i32, %c0_i32_0 : i32, i32
  }
  func.func @transform_10(%arg0: i32, %arg1: i32, %arg2: i32) -> (i32, i32) {
    %c0_i32 = arith.constant 0 : i32
    %c0_i32_0 = arith.constant 0 : i32
    %c0_i32_1 = arith.constant 0 : i32
    return %c0_i32, %c0_i32_0 : i32, i32
  }
  func.func @transform_11(%arg0: i32, %arg1: i32, %arg2: i32) -> (i32, i32) {
    %c0_i32 = arith.constant 0 : i32
    %c0_i32_0 = arith.constant 0 : i32
    %c0_i32_1 = arith.constant 0 : i32
    return %c0_i32, %c0_i32_0 : i32, i32
  }
  func.func @transform_12(%arg0: i32, %arg1: i32, %arg2: i32) -> (i32, i32, i32) {
    %c0_i32 = arith.constant 0 : i32
    %c0_i32_0 = arith.constant 0 : i32
    return %arg0, %arg1, %c0_i32 : i32, i32, i32
  }
}

module attributes {stable_mosaic.version = 11 : i64} {
  func.func @_ln_qkv_kernel(%arg0: i32, %arg1: i32, %arg2: memref<1x8x32xf32, #tpu.memory_space<vmem>>, %arg3: memref<1x32xf32, #tpu.memory_space<vmem>>, %arg4: memref<1x32xf32, #tpu.memory_space<vmem>>, %arg5: memref<32x96xbf16, #tpu.memory_space<vmem>>, %arg6: memref<1x4x8x8xbf16, #tpu.memory_space<vmem>>, %arg7: memref<1x4x8x8xbf16, #tpu.memory_space<vmem>>, %arg8: memref<1x4x8x8xbf16, #tpu.memory_space<vmem>>) attributes {dimension_semantics = [#tpu.dimension_semantics<parallel>, #tpu.dimension_semantics<parallel>], iteration_bounds = array<i64: 2, 1>, scalar_prefetch = 0 : i64, scratch_operands = 0 : i64, tpu.core_type = #tpu.core_type<tc>, window_params = [{transform_indices = @transform_0, window_bounds = array<i64: 1, 8, 32>}, {pipeline_mode = #tpu.pipeline_mode<synchronous>, transform_indices = @transform_1, window_bounds = array<i64: 1, 32>}, {pipeline_mode = #tpu.pipeline_mode<synchronous>, transform_indices = @transform_2, window_bounds = array<i64: 1, 32>}, {pipeline_mode = #tpu.pipeline_mode<synchronous>, transform_indices = @transform_3, window_bounds = array<i64: 32, 96>}, {transform_indices = @transform_4, window_bounds = array<i64: 1, 4, 8, 8>}, {transform_indices = @transform_5, window_bounds = array<i64: 1, 4, 8, 8>}, {transform_indices = @transform_6, window_bounds = array<i64: 1, 4, 8, 8>}]} {
    %c0 = arith.constant 0 : index
    %c0_0 = arith.constant 0 : index
    %c0_1 = arith.constant 0 : index
    %0 = vector.load %arg2[%c0, %c0_0, %c0_1] : memref<1x8x32xf32, #tpu.memory_space<vmem>>, vector<1x8x32xf32>
    %1 = vector.shape_cast %0 : vector<1x8x32xf32> to vector<8x32xf32>
    %c0_2 = arith.constant 0 : index
    %c0_3 = arith.constant 0 : index
    %2 = vector.load %arg3[%c0_2, %c0_3] : memref<1x32xf32, #tpu.memory_space<vmem>>, vector<1x32xf32>
    %c0_4 = arith.constant 0 : index
    %c0_5 = arith.constant 0 : index
    %3 = vector.load %arg4[%c0_4, %c0_5] : memref<1x32xf32, #tpu.memory_space<vmem>>, vector<1x32xf32>
    %cst = arith.constant dense<0.000000e+00> : vector<8xf32>
    %4 = vector.multi_reduction <add>, %1, %cst [1] : vector<8x32xf32> to vector<8xf32>
    %5 = vector.shape_cast %4 : vector<8xf32> to vector<8x1xf32>
    %cst_6 = arith.constant 3.200000e+01 : f32
    %6 = vector.broadcast %cst_6 : f32 to vector<8x1xf32>
    %7 = arith.divf %5, %6 : vector<8x1xf32>
    %8 = vector.broadcast %7 : vector<8x1xf32> to vector<8x32xf32>
    %9 = arith.subf %1, %8 : vector<8x32xf32>
    %10 = arith.mulf %9, %9 : vector<8x32xf32>
    %cst_7 = arith.constant dense<0.000000e+00> : vector<8xf32>
    %11 = vector.multi_reduction <add>, %10, %cst_7 [1] : vector<8x32xf32> to vector<8xf32>
    %12 = vector.shape_cast %11 : vector<8xf32> to vector<8x1xf32>
    %cst_8 = arith.constant 3.200000e+01 : f32
    %13 = vector.broadcast %cst_8 : f32 to vector<8x1xf32>
    %14 = arith.divf %12, %13 : vector<8x1xf32>
    %15 = vector.broadcast %7 : vector<8x1xf32> to vector<8x32xf32>
    %16 = arith.subf %1, %15 : vector<8x32xf32>
    %cst_9 = arith.constant 9.99999974E-6 : f32
    %17 = vector.broadcast %cst_9 : f32 to vector<8x1xf32>
    %18 = arith.addf %14, %17 : vector<8x1xf32>
    %19 = math.rsqrt %18 : vector<8x1xf32>
    %20 = vector.broadcast %19 : vector<8x1xf32> to vector<8x32xf32>
    %21 = arith.mulf %16, %20 : vector<8x32xf32>
    %22 = vector.broadcast %2 : vector<1x32xf32> to vector<8x32xf32>
    %23 = arith.mulf %21, %22 : vector<8x32xf32>
    %24 = vector.broadcast %3 : vector<1x32xf32> to vector<8x32xf32>
    %25 = arith.addf %23, %24 : vector<8x32xf32>
    %26 = arith.truncf %25 : vector<8x32xf32> to vector<8x32xbf16>
    %c0_10 = arith.constant 0 : index
    %c0_11 = arith.constant 0 : index
    %27 = vector.load %arg5[%c0_10, %c0_11] : memref<32x96xbf16, #tpu.memory_space<vmem>>, vector<32x96xbf16>
    %cst_12 = arith.constant dense<0.000000e+00> : vector<8x96xf32>
    %28 = tpu.matmul %26, %27, %cst_12 {dimension_numbers = #tpu.dot_dimension_numbers<[1], [0], [0], [1], [0, 0, 1, 1], [], []>} : vector<8x32xbf16>, vector<32x96xbf16>, vector<8x96xf32> -> vector<8x96xf32>
    %29 = vector.extract_strided_slice %28 {offsets = [0, 0], sizes = [8, 32], strides = [1, 1]} : vector<8x96xf32> to vector<8x32xf32>
    %cst_13 = arith.constant 0.353553385 : f32
    %30 = vector.broadcast %cst_13 : f32 to vector<8x32xf32>
    %31 = arith.mulf %29, %30 : vector<8x32xf32>
    %32 = arith.truncf %31 : vector<8x32xf32> to vector<8x32xbf16>
    %33 = vector.extract_strided_slice %28 {offsets = [0, 32], sizes = [8, 32], strides = [1, 1]} : vector<8x96xf32> to vector<8x32xf32>
    %34 = arith.truncf %33 : vector<8x32xf32> to vector<8x32xbf16>
    %35 = tpu.transpose %34, [1, 0] : vector<8x32xbf16> -> vector<32x8xbf16>
    %36 = vector.extract_strided_slice %28 {offsets = [0, 64], sizes = [8, 32], strides = [1, 1]} : vector<8x96xf32> to vector<8x32xf32>
    %37 = arith.truncf %36 : vector<8x32xf32> to vector<8x32xbf16>
    %38 = vector.extract_strided_slice %32 {offsets = [0, 0], sizes = [8, 8], strides = [1, 1]} : vector<8x32xbf16> to vector<8x8xbf16>
    %c0_14 = arith.constant 0 : index
    %c0_15 = arith.constant 0 : index
    %c0_16 = arith.constant 0 : index
    %c0_17 = arith.constant 0 : index
    %39 = vector.load %arg6[%c0_14, %c0_15, %c0_16, %c0_17] : memref<1x4x8x8xbf16, #tpu.memory_space<vmem>>, vector<1x1x8x8xbf16>
    %40 = vector.shape_cast %39 : vector<1x1x8x8xbf16> to vector<8x8xbf16>
    %41 = vector.shape_cast %38 : vector<8x8xbf16> to vector<1x1x8x8xbf16>
    tpu.vector_store %arg6[%c0_14, %c0_15, %c0_16, %c0_17], %41 {strides = array<i32>} : memref<1x4x8x8xbf16, #tpu.memory_space<vmem>>, vector<1x1x8x8xbf16>,
    %42 = vector.extract_strided_slice %35 {offsets = [0, 0], sizes = [8, 8], strides = [1, 1]} : vector<32x8xbf16> to vector<8x8xbf16>
    %c0_18 = arith.constant 0 : index
    %c0_19 = arith.constant 0 : index
    %c0_20 = arith.constant 0 : index
    %c0_21 = arith.constant 0 : index
    %43 = vector.load %arg7[%c0_18, %c0_19, %c0_20, %c0_21] : memref<1x4x8x8xbf16, #tpu.memory_space<vmem>>, vector<1x1x8x8xbf16>
    %44 = vector.shape_cast %43 : vector<1x1x8x8xbf16> to vector<8x8xbf16>
    %45 = vector.shape_cast %42 : vector<8x8xbf16> to vector<1x1x8x8xbf16>
    tpu.vector_store %arg7[%c0_18, %c0_19, %c0_20, %c0_21], %45 {strides = array<i32>} : memref<1x4x8x8xbf16, #tpu.memory_space<vmem>>, vector<1x1x8x8xbf16>,
    %46 = vector.extract_strided_slice %37 {offsets = [0, 0], sizes = [8, 8], strides = [1, 1]} : vector<8x32xbf16> to vector<8x8xbf16>
    %c0_22 = arith.constant 0 : index
    %c0_23 = arith.constant 0 : index
    %c0_24 = arith.constant 0 : index
    %c0_25 = arith.constant 0 : index
    %47 = vector.load %arg8[%c0_22, %c0_23, %c0_24, %c0_25] : memref<1x4x8x8xbf16, #tpu.memory_space<vmem>>, vector<1x1x8x8xbf16>
    %48 = vector.shape_cast %47 : vector<1x1x8x8xbf16> to vector<8x8xbf16>
    %49 = vector.shape_cast %46 : vector<8x8xbf16> to vector<1x1x8x8xbf16>
    tpu.vector_store %arg8[%c0_22, %c0_23, %c0_24, %c0_25], %49 {strides = array<i32>} : memref<1x4x8x8xbf16, #tpu.memory_space<vmem>>, vector<1x1x8x8xbf16>,
    %50 = vector.extract_strided_slice %32 {offsets = [0, 8], sizes = [8, 8], strides = [1, 1]} : vector<8x32xbf16> to vector<8x8xbf16>
    %c0_26 = arith.constant 0 : index
    %c1 = arith.constant 1 : index
    %c0_27 = arith.constant 0 : index
    %c0_28 = arith.constant 0 : index
    %51 = vector.load %arg6[%c0_26, %c1, %c0_27, %c0_28] : memref<1x4x8x8xbf16, #tpu.memory_space<vmem>>, vector<1x1x8x8xbf16>
    %52 = vector.shape_cast %51 : vector<1x1x8x8xbf16> to vector<8x8xbf16>
    %53 = vector.shape_cast %50 : vector<8x8xbf16> to vector<1x1x8x8xbf16>
    tpu.vector_store %arg6[%c0_26, %c1, %c0_27, %c0_28], %53 {strides = array<i32>} : memref<1x4x8x8xbf16, #tpu.memory_space<vmem>>, vector<1x1x8x8xbf16>,
    %54 = vector.extract_strided_slice %35 {offsets = [8, 0], sizes = [8, 8], strides = [1, 1]} : vector<32x8xbf16> to vector<8x8xbf16>
    %c0_29 = arith.constant 0 : index
    %c1_30 = arith.constant 1 : index
    %c0_31 = arith.constant 0 : index
    %c0_32 = arith.constant 0 : index
    %55 = vector.load %arg7[%c0_29, %c1_30, %c0_31, %c0_32] : memref<1x4x8x8xbf16, #tpu.memory_space<vmem>>, vector<1x1x8x8xbf16>
    %56 = vector.shape_cast %55 : vector<1x1x8x8xbf16> to vector<8x8xbf16>
    %57 = vector.shape_cast %54 : vector<8x8xbf16> to vector<1x1x8x8xbf16>
    tpu.vector_store %arg7[%c0_29, %c1_30, %c0_31, %c0_32], %57 {strides = array<i32>} : memref<1x4x8x8xbf16, #tpu.memory_space<vmem>>, vector<1x1x8x8xbf16>,
    %58 = vector.extract_strided_slice %37 {offsets = [0, 8], sizes = [8, 8], strides = [1, 1]} : vector<8x32xbf16> to vector<8x8xbf16>
    %c0_33 = arith.constant 0 : index
    %c1_34 = arith.constant 1 : index
    %c0_35 = arith.constant 0 : index
    %c0_36 = arith.constant 0 : index
    %59 = vector.load %arg8[%c0_33, %c1_34, %c0_35, %c0_36] : memref<1x4x8x8xbf16, #tpu.memory_space<vmem>>, vector<1x1x8x8xbf16>
    %60 = vector.shape_cast %59 : vector<1x1x8x8xbf16> to vector<8x8xbf16>
    %61 = vector.shape_cast %58 : vector<8x8xbf16> to vector<1x1x8x8xbf16>
    tpu.vector_store %arg8[%c0_33, %c1_34, %c0_35, %c0_36], %61 {strides = array<i32>} : memref<1x4x8x8xbf16, #tpu.memory_space<vmem>>, vector<1x1x8x8xbf16>,
    %62 = vector.extract_strided_slice %32 {offsets = [0, 16], sizes = [8, 8], strides = [1, 1]} : vector<8x32xbf16> to vector<8x8xbf16>
    %c0_37 = arith.constant 0 : index
    %c2 = arith.constant 2 : index
    %c0_38 = arith.constant 0 : index
    %c0_39 = arith.constant 0 : index
    %63 = vector.load %arg6[%c0_37, %c2, %c0_38, %c0_39] : memref<1x4x8x8xbf16, #tpu.memory_space<vmem>>, vector<1x1x8x8xbf16>
    %64 = vector.shape_cast %63 : vector<1x1x8x8xbf16> to vector<8x8xbf16>
    %65 = vector.shape_cast %62 : vector<8x8xbf16> to vector<1x1x8x8xbf16>
    tpu.vector_store %arg6[%c0_37, %c2, %c0_38, %c0_39], %65 {strides = array<i32>} : memref<1x4x8x8xbf16, #tpu.memory_space<vmem>>, vector<1x1x8x8xbf16>,
    %66 = vector.extract_strided_slice %35 {offsets = [16, 0], sizes = [8, 8], strides = [1, 1]} : vector<32x8xbf16> to vector<8x8xbf16>
    %c0_40 = arith.constant 0 : index
    %c2_41 = arith.constant 2 : index
    %c0_42 = arith.constant 0 : index
    %c0_43 = arith.constant 0 : index
    %67 = vector.load %arg7[%c0_40, %c2_41, %c0_42, %c0_43] : memref<1x4x8x8xbf16, #tpu.memory_space<vmem>>, vector<1x1x8x8xbf16>
    %68 = vector.shape_cast %67 : vector<1x1x8x8xbf16> to vector<8x8xbf16>
    %69 = vector.shape_cast %66 : vector<8x8xbf16> to vector<1x1x8x8xbf16>
    tpu.vector_store %arg7[%c0_40, %c2_41, %c0_42, %c0_43], %69 {strides = array<i32>} : memref<1x4x8x8xbf16, #tpu.memory_space<vmem>>, vector<1x1x8x8xbf16>,
    %70 = vector.extract_strided_slice %37 {offsets = [0, 16], sizes = [8, 8], strides = [1, 1]} : vector<8x32xbf16> to vector<8x8xbf16>
    %c0_44 = arith.constant 0 : index
    %c2_45 = arith.constant 2 : index
    %c0_46 = arith.constant 0 : index
    %c0_47 = arith.constant 0 : index
    %71 = vector.load %arg8[%c0_44, %c2_45, %c0_46, %c0_47] : memref<1x4x8x8xbf16, #tpu.memory_space<vmem>>, vector<1x1x8x8xbf16>
    %72 = vector.shape_cast %71 : vector<1x1x8x8xbf16> to vector<8x8xbf16>
    %73 = vector.shape_cast %70 : vector<8x8xbf16> to vector<1x1x8x8xbf16>
    tpu.vector_store %arg8[%c0_44, %c2_45, %c0_46, %c0_47], %73 {strides = array<i32>} : memref<1x4x8x8xbf16, #tpu.memory_space<vmem>>, vector<1x1x8x8xbf16>,
    %74 = vector.extract_strided_slice %32 {offsets = [0, 24], sizes = [8, 8], strides = [1, 1]} : vector<8x32xbf16> to vector<8x8xbf16>
    %c0_48 = arith.constant 0 : index
    %c3 = arith.constant 3 : index
    %c0_49 = arith.constant 0 : index
    %c0_50 = arith.constant 0 : index
    %75 = vector.load %arg6[%c0_48, %c3, %c0_49, %c0_50] : memref<1x4x8x8xbf16, #tpu.memory_space<vmem>>, vector<1x1x8x8xbf16>
    %76 = vector.shape_cast %75 : vector<1x1x8x8xbf16> to vector<8x8xbf16>
    %77 = vector.shape_cast %74 : vector<8x8xbf16> to vector<1x1x8x8xbf16>
    tpu.vector_store %arg6[%c0_48, %c3, %c0_49, %c0_50], %77 {strides = array<i32>} : memref<1x4x8x8xbf16, #tpu.memory_space<vmem>>, vector<1x1x8x8xbf16>,
    %78 = vector.extract_strided_slice %35 {offsets = [24, 0], sizes = [8, 8], strides = [1, 1]} : vector<32x8xbf16> to vector<8x8xbf16>
    %c0_51 = arith.constant 0 : index
    %c3_52 = arith.constant 3 : index
    %c0_53 = arith.constant 0 : index
    %c0_54 = arith.constant 0 : index
    %79 = vector.load %arg7[%c0_51, %c3_52, %c0_53, %c0_54] : memref<1x4x8x8xbf16, #tpu.memory_space<vmem>>, vector<1x1x8x8xbf16>
    %80 = vector.shape_cast %79 : vector<1x1x8x8xbf16> to vector<8x8xbf16>
    %81 = vector.shape_cast %78 : vector<8x8xbf16> to vector<1x1x8x8xbf16>
    tpu.vector_store %arg7[%c0_51, %c3_52, %c0_53, %c0_54], %81 {strides = array<i32>} : memref<1x4x8x8xbf16, #tpu.memory_space<vmem>>, vector<1x1x8x8xbf16>,
    %82 = vector.extract_strided_slice %37 {offsets = [0, 24], sizes = [8, 8], strides = [1, 1]} : vector<8x32xbf16> to vector<8x8xbf16>
    %c0_55 = arith.constant 0 : index
    %c3_56 = arith.constant 3 : index
    %c0_57 = arith.constant 0 : index
    %c0_58 = arith.constant 0 : index
    %83 = vector.load %arg8[%c0_55, %c3_56, %c0_57, %c0_58] : memref<1x4x8x8xbf16, #tpu.memory_space<vmem>>, vector<1x1x8x8xbf16>
    %84 = vector.shape_cast %83 : vector<1x1x8x8xbf16> to vector<8x8xbf16>
    %85 = vector.shape_cast %82 : vector<8x8xbf16> to vector<1x1x8x8xbf16>
    tpu.vector_store %arg8[%c0_55, %c3_56, %c0_57, %c0_58], %85 {strides = array<i32>} : memref<1x4x8x8xbf16, #tpu.memory_space<vmem>>, vector<1x1x8x8xbf16>,
    return
  }
  func.func @transform_0(%arg0: i32, %arg1: i32) -> (i32, i32, i32) {
    %c0_i32 = arith.constant 0 : i32
    %c0_i32_0 = arith.constant 0 : i32
    return %arg0, %arg1, %c0_i32 : i32, i32, i32
  }
  func.func @transform_1(%arg0: i32, %arg1: i32) -> (i32, i32) {
    %c0_i32 = arith.constant 0 : i32
    %c0_i32_0 = arith.constant 0 : i32
    %c0_i32_1 = arith.constant 0 : i32
    return %c0_i32, %c0_i32_0 : i32, i32
  }
  func.func @transform_2(%arg0: i32, %arg1: i32) -> (i32, i32) {
    %c0_i32 = arith.constant 0 : i32
    %c0_i32_0 = arith.constant 0 : i32
    %c0_i32_1 = arith.constant 0 : i32
    return %c0_i32, %c0_i32_0 : i32, i32
  }
  func.func @transform_3(%arg0: i32, %arg1: i32) -> (i32, i32) {
    %c0_i32 = arith.constant 0 : i32
    %c0_i32_0 = arith.constant 0 : i32
    %c0_i32_1 = arith.constant 0 : i32
    return %c0_i32, %c0_i32_0 : i32, i32
  }
  func.func @transform_4(%arg0: i32, %arg1: i32) -> (i32, i32, i32, i32) {
    %c0_i32 = arith.constant 0 : i32
    %c0_i32_0 = arith.constant 0 : i32
    %c0_i32_1 = arith.constant 0 : i32
    return %arg0, %c0_i32, %arg1, %c0_i32_0 : i32, i32, i32, i32
  }
  func.func @transform_5(%arg0: i32, %arg1: i32) -> (i32, i32, i32, i32) {
    %c0_i32 = arith.constant 0 : i32
    %c0_i32_0 = arith.constant 0 : i32
    %c0_i32_1 = arith.constant 0 : i32
    return %arg0, %c0_i32, %c0_i32_0, %arg1 : i32, i32, i32, i32
  }
  func.func @transform_6(%arg0: i32, %arg1: i32) -> (i32, i32, i32, i32) {
    %c0_i32 = arith.constant 0 : i32
    %c0_i32_0 = arith.constant 0 : i32
    %c0_i32_1 = arith.constant 0 : i32
    return %arg0, %c0_i32, %arg1, %c0_i32_0 : i32, i32, i32, i32
  }
}

</mosaic_0001>

<llo_original>
// kernel: block_forward.2
$region0: #{block_forward.2}
  #allocation0 [shape = 'u32[]', space=smem, size = 0x4, offset = 0x4, fixed_abs, tag = 'smem constant byte address 0x4 - core index']
  #allocation1 [shape = 'u32[72,128]{1,0:T(1,128)}', space=vmem, size = 0x9000, scoped, tag = 'internal scratch']
  %s0 = inlined_call_operand.vmem [shape: f32[2,8,32], index: 0, kind: input, shape index: {}]
  %s1 = inlined_call_operand.vmem [shape: f32[1,32], index: 1, kind: input, shape index: {}]
  %s2 = inlined_call_operand.vmem [shape: f32[1,32], index: 2, kind: input, shape index: {}]
  %s3 = inlined_call_operand.vmem [shape: bf16[32,96], index: 3, kind: input, shape index: {}]
  %s4 = inlined_call_operand.vmem [shape: bf16[2,4,8,8], index: 4, kind: output, shape index: {0}]
  %s5 = inlined_call_operand.vmem [shape: bf16[2,4,8,8], index: 5, kind: output, shape index: {1}]
  %s6 = inlined_call_operand.vmem [shape: bf16[2,4,8,8], index: 6, kind: output, shape index: {2}]
  %7 = xla_tuple %s4, %s5, %s6
  %s8 = sld [smem:[#allocation0]]
  $region65: #{block_forward.2} parent=0
    _
  %s10 = ssub.s32 1, %s8
  %s11 = scalar_select 0, %s10, %s8
  loop: start=0, step=1, limit=4
  $region2: #{block_forward.2} parent=0 // loop_pre_header
    _
  $region3: #{block_forward.2} parent=0 // loop_header
    %s13 = sphi 0, %s17
    %p14 = scmp.ge.s32.totalorder %s13, 4
    %s20 = sphi 0, %s32
    %s21 = sphi 0, %s28
    %s22 = sphi 0, %s20
    %s23 = sphi 0, %s21
    %s24 = sphi 0, %s22
    %s25 = sphi 0, %s23
    %s37 = sphi 0, %s39
    %s40 = sphi 0, %s37
    %s41 = sphi 0, %s40
    %s57 = sphi 0, %s41
    %s61 = sphi 0, %s61
    %s63 = sphi 0, %s61
    %s64 = sphi 0, %s63
    %s78 = sphi 0, %s64
    %s82 = sphi 0, %s82
    %s84 = sphi 0, %s82
    %s85 = sphi 0, %s84
    %s99 = sphi 0, %s85
    %s103 = sphi 0, %s103
    %s105 = sphi 0, %s103
    %s106 = sphi 0, %s105
    %s120 = sphi 0, %s106
    %s128 = sphi 0, %s130
    %s131 = sphi 0, %s128
    %s132 = sphi 0, %s131
    %s148 = sphi 0, %s132
    %s156 = sphi 0, %s158
    %s159 = sphi 0, %s156
    %s160 = sphi 0, %s159
    %s176 = sphi 0, %s160
    %s184 = sphi 0, %s186
    %s187 = sphi 0, %s184
    %s188 = sphi 0, %s187
    %s204 = sphi 0, %s188
  $region4: #{block_forward.2} parent=0 // loop_header_branch
    %16 = sbr.rel (%p14) target = $region8
  $region5: #{block_forward.2} parent=0 // loop_body
    %s18 = ssub.s32 %s13, 1
    %s19 = ssub.s32 %s13, 2
    %s26 = sadd.s32 1, %s21
    %p27 = scmp.ge.s32.totalorder %s26, 1
    %s28 = scalar_select %p27, 0, %s26
    %s29 = sadd.s32 1, %s20
    %s30 = scalar_select %p27, %s29, %s20
    %p31 = scmp.ge.s32.totalorder %s30, 2
    %s32 = scalar_select %p31, 0, %s30
    %s33 = ssub.s32 %s20, %s32
    %s34 = ssub.s32 %s21, %s28
    %s35 = sor.u32 %s33, %s34
    %p36 = scmp.eq.s32.totalorder %s35, 0
    %s38 = sadd.s32 %s37, 1
    %s39 = scalar_select %p36, %s37, %s38
    %p42 = pneg %p36
    %p43 = scmp.eq.s32.totalorder %s13, 1
    %p44 = por %p42, %p43
    %p45 = scmp.ne.s32.totalorder %s37, %s40
    %p46 = scmp.eq.s32.totalorder %s13, 0
    %p47 = por %p45, %p46
    %p48 = scmp.ne.s32.totalorder %s37, %s40
    %p49 = scmp.eq.s32.totalorder %s18, 1
    %p50 = por %p48, %p49
    %p51 = scmp.ne.s32.totalorder %s40, %s41
    %p52 = scmp.eq.s32.totalorder %s18, 0
    %p53 = por %p51, %p52
    %p54 = scmp.ne.s32.totalorder %s40, %s41
    %p55 = scmp.eq.s32.totalorder %s19, 1
    %p56 = por %p54, %p55
    %p58 = scmp.ne.s32.totalorder %s41, %s57
    %p59 = scmp.eq.s32.totalorder %s19, 0
    %p60 = por %p58, %p59
    %s62 = sadd.s32 %s61, 1
    %p65 = scmp.eq.s32.totalorder %s13, 1
    %p66 = scmp.ne.s32.totalorder %s61, %s63
    %p67 = scmp.eq.s32.totalorder %s13, 0
    %p68 = por %p66, %p67
    %p69 = scmp.ne.s32.totalorder %s61, %s63
    %p70 = scmp.eq.s32.totalorder %s18, 1
    %p71 = por %p69, %p70
    %p72 = scmp.ne.s32.totalorder %s63, %s64
    %p73 = scmp.eq.s32.totalorder %s18, 0
    %p74 = por %p72, %p73
    %p75 = scmp.ne.s32.totalorder %s63, %s64
    %p76 = scmp.eq.s32.totalorder %s19, 1
    %p77 = por %p75, %p76
    %p79 = scmp.ne.s32.totalorder %s64, %s78
    %p80 = scmp.eq.s32.totalorder %s19, 0
    %p81 = por %p79, %p80
    %s83 = sadd.s32 %s82, 1
    %p86 = scmp.eq.s32.totalorder %s13, 1
    %p87 = scmp.ne.s32.totalorder %s82, %s84
    %p88 = scmp.eq.s32.totalorder %s13, 0
    %p89 = por %p87, %p88
    %p90 = scmp.ne.s32.totalorder %s82, %s84
    %p91 = scmp.eq.s32.totalorder %s18, 1
    %p92 = por %p90, %p91
    %p93 = scmp.ne.s32.totalorder %s84, %s85
    %p94 = scmp.eq.s32.totalorder %s18, 0
    %p95 = por %p93, %p94
    %p96 = scmp.ne.s32.totalorder %s84, %s85
    %p97 = scmp.eq.s32.totalorder %s19, 1
    %p98 = por %p96, %p97
    %p100 = scmp.ne.s32.totalorder %s85, %s99
    %p101 = scmp.eq.s32.totalorder %s19, 0
    %p102 = por %p100, %p101
    %s104 = sadd.s32 %s103, 1
    %p107 = scmp.eq.s32.totalorder %s13, 1
    %p108 = scmp.ne.s32.totalorder %s103, %s105
    %p109 = scmp.eq.s32.totalorder %s13, 0
    %p110 = por %p108, %p109
    %p111 = scmp.ne.s32.totalorder %s103, %s105
    %p112 = scmp.eq.s32.totalorder %s18, 1
    %p113 = por %p111, %p112
    %p114 = scmp.ne.s32.totalorder %s105, %s106
    %p115 = scmp.eq.s32.totalorder %s18, 0
    %p116 = por %p114, %p115
    %p117 = scmp.ne.s32.totalorder %s105, %s106
    %p118 = scmp.eq.s32.totalorder %s19, 1
    %p119 = por %p117, %p118
    %p121 = scmp.ne.s32.totalorder %s106, %s120
    %p122 = scmp.eq.s32.totalorder %s19, 0
    %p123 = por %p121, %p122
    %s124 = ssub.s32 %s20, %s32
    %s125 = ssub.s32 %s21, %s28
    %s126 = sor.u32 %s124, %s125
    %p127 = scmp.eq.s32.totalorder %s126, 0
    %s129 = sadd.s32 %s128, 1
    %s130 = scalar_select %p127, %s128, %s129
    %p133 = pneg %p127
    %p134 = scmp.eq.s32.totalorder %s13, 1
    %p135 = por %p133, %p134
    %p136 = scmp.ne.s32.totalorder %s128, %s131
    %p137 = scmp.eq.s32.totalorder %s13, 0
    %p138 = por %p136, %p137
    %p139 = scmp.ne.s32.totalorder %s128, %s131
    %p140 = scmp.eq.s32.totalorder %s18, 1
    %p141 = por %p139, %p140
    %p142 = scmp.ne.s32.totalorder %s131, %s132
    %p143 = scmp.eq.s32.totalorder %s18, 0
    %p144 = por %p142, %p143
    %p145 = scmp.ne.s32.totalorder %s131, %s132
    %p146 = scmp.eq.s32.totalorder %s19, 1
    %p147 = por %p145, %p146
    %p149 = scmp.ne.s32.totalorder %s132, %s148
    %p150 = scmp.eq.s32.totalorder %s19, 0
    %p151 = por %p149, %p150
    %s152 = ssub.s32 %s20, %s32
    %s153 = ssub.s32 %s21, %s28
    %s154 = sor.u32 %s152, %s153
    %p155 = scmp.eq.s32.totalorder %s154, 0
    %s157 = sadd.s32 %s156, 1
    %s158 = scalar_select %p155, %s156, %s157
    %p161 = pneg %p155
    %p162 = scmp.eq.s32.totalorder %s13, 1
    %p163 = por %p161, %p162
    %p164 = scmp.ne.s32.totalorder %s156, %s159
    %p165 = scmp.eq.s32.totalorder %s13, 0
    %p166 = por %p164, %p165
    %p167 = scmp.ne.s32.totalorder %s156, %s159
    %p168 = scmp.eq.s32.totalorder %s18, 1
    %p169 = por %p167, %p168
    %p170 = scmp.ne.s32.totalorder %s159, %s160
    %p171 = scmp.eq.s32.totalorder %s18, 0
    %p172 = por %p170, %p171
    %p173 = scmp.ne.s32.totalorder %s159, %s160
    %p174 = scmp.eq.s32.totalorder %s19, 1
    %p175 = por %p173, %p174
    %p177 = scmp.ne.s32.totalorder %s160, %s176
    %p178 = scmp.eq.s32.totalorder %s19, 0
    %p179 = por %p177, %p178
    %s180 = ssub.s32 %s20, %s32
    %s181 = ssub.s32 %s21, %s28
    %s182 = sor.u32 %s180, %s181
    %p183 = scmp.eq.s32.totalorder %s182, 0
    %s185 = sadd.s32 %s184, 1
    %s186 = scalar_select %p183, %s184, %s185
    %p189 = pneg %p183
    %p190 = scmp.eq.s32.totalorder %s13, 1
    %p191 = por %p189, %p190
    %p192 = scmp.ne.s32.totalorder %s184, %s187
    %p193 = scmp.eq.s32.totalorder %s13, 0
    %p194 = por %p192, %p193
    %p195 = scmp.ne.s32.totalorder %s184, %s187
    %p196 = scmp.eq.s32.totalorder %s18, 1
    %p197 = por %p195, %p196
    %p198 = scmp.ne.s32.totalorder %s187, %s188
    %p199 = scmp.eq.s32.totalorder %s18, 0
    %p200 = por %p198, %p199
    %p201 = scmp.ne.s32.totalorder %s187, %s188
    %p202 = scmp.eq.s32.totalorder %s19, 1
    %p203 = por %p201, %p202
    %p205 = scmp.ne.s32.totalorder %s188, %s204
    %p206 = scmp.eq.s32.totalorder %s19, 0
    %p207 = por %p205, %p206
    %p208 = scmp.le.s32.totalorder 1, %s13
    %p209 = scmp.lt.s32.totalorder %s13, 3
    %p210 = pnand %p208, %p209
    %p211 = pneg %p210
    // Predicated region
    $region9: #{block_forward.2} parent=5 // pred_check
      _
    $region10: #{block_forward.2} parent=5 // pred_check_branch
      %213 = sbr.rel (%p210) target = $region12
    $region11: #{block_forward.2} parent=5 // pred_region
      %s214 = ssub.s32 %s13, 1
      // Predicated region
      $region13: #{block_forward.2} parent=11 // pred_check
        %p215 = pneg %p74
      $region14: #{block_forward.2} parent=11 // pred_check_branch
        %217 = sbr.rel (%p215) target = $region16
      $region15: #{block_forward.2} parent=11 // pred_region
        _
      $region16: #{block_forward.2} parent=11 // pred_fallthru
        _
      // Predicated region
      $region17: #{block_forward.2} parent=11 // pred_check
        %p218 = pneg %p95
      $region18: #{block_forward.2} parent=11 // pred_check_branch
        %220 = sbr.rel (%p218) target = $region20
      $region19: #{block_forward.2} parent=11 // pred_region
        _
      $region20: #{block_forward.2} parent=11 // pred_fallthru
        _
      // Predicated region
      $region21: #{block_forward.2} parent=11 // pred_check
        %p221 = pneg %p116
      $region22: #{block_forward.2} parent=11 // pred_check_branch
        %223 = sbr.rel (%p221) target = $region24
      $region23: #{block_forward.2} parent=11 // pred_region
        _
      $region24: #{block_forward.2} parent=11 // pred_fallthru
        _
    $region12: #{block_forward.2} parent=5 // pred_fallthru
      _
    %p224 = scmp.lt.s32.totalorder %s13, 2
    // Predicated region
    $region25: #{block_forward.2} parent=5 // pred_check
      %p225 = pneg %p224
    $region26: #{block_forward.2} parent=5 // pred_check_branch
      %227 = sbr.rel (%p225) target = $region28
    $region27: #{block_forward.2} parent=5 // pred_region
      // Predicated region
      $region29: #{block_forward.2} parent=27 // pred_check
        %p228 = pneg %p47
      $region30: #{block_forward.2} parent=27 // pred_check_branch
        %230 = sbr.rel (%p228) target = $region32
      $region31: #{block_forward.2} parent=27 // pred_region
        %p231 = scmp.lt.s32.totalorder %s20, 1
        %s232 = scalar_select %p231, %s20, 1
        %p233 = scmp.lt.s32.totalorder %s21, 0
        %s234 = scalar_select %p233, %s21, 0
        %s235 = sadd.s32 %s234, %s232
        %s236 = smul.addr %s235, 8
        %s237 = scalar_lea.vmem %s0, %s236
      $region32: #{block_forward.2} parent=27 // pred_fallthru
        _
    $region28: #{block_forward.2} parent=5 // pred_fallthru
      _
    %p238 = scmp.le.s32.totalorder 1, %s13
    %p239 = scmp.lt.s32.totalorder %s13, 3
    %p240 = pnand %p238, %p239
    %p241 = pneg %p240
    // Predicated region
    $region33: #{block_forward.2} parent=5 // pred_check
      _
    $region34: #{block_forward.2} parent=5 // pred_check_branch
      %243 = sbr.rel (%p240) target = $region36
    $region35: #{block_forward.2} parent=5 // pred_region
      %s244 = ssub.s32 %s13, 1
      %p245 = scmp.lt.s32.totalorder %s22, 1
      %s246 = scalar_select %p245, %s22, 1
      %p247 = scmp.lt.s32.totalorder %s23, 0
      %s248 = scalar_select %p247, %s23, 0
      %s249 = sadd.s32 %s248, %s246
      %s250 = smul.addr %s249, 8
      %s251 = scalar_lea.vmem %s0, %s250
      %p252 = pneg %p53
      %p253 = pneg %p50
      %p254 = pneg %p74
      %p255 = pneg %p71
      %p256 = pneg %p95
      %p257 = pneg %p92
      %p258 = pneg %p116
      %p259 = pneg %p113
      %p260 = pneg %p144
      %p261 = pneg %p141
      %p262 = scmp.lt.s32.totalorder %s22, 1
      %s263 = scalar_select %p262, %s22, 1
      %p264 = scmp.lt.s32.totalorder %s23, 0
      %s265 = scalar_select %p264, %s23, 0
      %s266 = smul.addr %s263, 4
      %s267 = sadd.s32 %s265, %s266
      %s268 = smul.addr %s267, 4
      %s269 = scalar_lea.vmem %s4, %s268
      %p270 = pneg %p172
      %p271 = pneg %p169
      %p272 = scmp.lt.s32.totalorder %s22, 1
      %s273 = scalar_select %p272, %s22, 1
      %p274 = scmp.lt.s32.totalorder %s23, 0
      %s275 = scalar_select %p274, %s23, 0
      %s276 = smul.addr %s273, 4
      %s277 = sadd.s32 %s275, %s276
      %s278 = smul.addr %s277, 4
      %s279 = scalar_lea.vmem %s5, %s278
      %p280 = pneg %p200
      %p281 = pneg %p197
      %p282 = scmp.lt.s32.totalorder %s22, 1
      %s283 = scalar_select %p282, %s22, 1
      %p284 = scmp.lt.s32.totalorder %s23, 0
      %s285 = scalar_select %p284, %s23, 0
      %s286 = smul.addr %s283, 4
      %s287 = sadd.s32 %s285, %s286
      %s288 = smul.addr %s287, 4
      %s289 = scalar_lea.vmem %s6, %s288
      %p290 = scmp.lt.s32.totalorder %s22, 1
      %s291 = scalar_select %p290, %s22, 1
      %p292 = scmp.lt.s32.totalorder %s23, 0
      %s293 = scalar_select %p292, %s23, 0
      %s294 = sadd.s32 %s293, %s291
      %s295 = smul.addr %s294, 8
      %s296 = scalar_lea.vmem %s0, %s295
      %p297 = scmp.lt.s32.totalorder %s22, 1
      %s298 = scalar_select %p297, %s22, 1
      %p299 = scmp.lt.s32.totalorder %s23, 0
      %s300 = scalar_select %p299, %s23, 0
      %s301 = smul.addr %s298, 4
      %s302 = sadd.s32 %s300, %s301
      %s303 = smul.addr %s302, 4
      %s304 = scalar_lea.vmem %s4, %s303
      %p305 = scmp.lt.s32.totalorder %s22, 1
      %s306 = scalar_select %p305, %s22, 1
      %p307 = scmp.lt.s32.totalorder %s23, 0
      %s308 = scalar_select %p307, %s23, 0
      %s309 = smul.addr %s306, 4
      %s310 = sadd.s32 %s308, %s309
      %s311 = smul.addr %s310, 4
      %s312 = scalar_lea.vmem %s5, %s311
      %p313 = scmp.lt.s32.totalorder %s22, 1
      %s314 = scalar_select %p313, %s22, 1
      %p315 = scmp.lt.s32.totalorder %s23, 0
      %s316 = scalar_select %p315, %s23, 0
      %s317 = smul.addr %s314, 4
      %s318 = sadd.s32 %s316, %s317
      %s319 = smul.addr %s318, 4
      %s320 = scalar_lea.vmem %s6, %s319
      %v322 = vld [vmem:[%s296] sm:$0xff]
      %v323 = vld [vmem:[%s1] sm:$0x1]
      %v324 = vld [vmem:[%s2] sm:$0x1]
      %vm325 = vcmask 261120
      %v326 = vsel %vm325, %v322, 0.0
      %327 = vadd.xlane.f32.xlu0 %v326
      %v328 = vpop.xlane.xlu0 %327
      %v329 = vrcp.pop 32.0
      %v330 = vmul.f32 32.0, %v329
      %v331 = vsub.f32 1.0, %v330
      %v332 = vmul.f32 %v329, %v331
      %v333 = vadd.f32 %v329, %v332
      %vm334 = vweird.f32 %v329
      %v335 = vsel %vm334, %v329, %v333
      %v336 = vmul.f32 %v328, %v335
      %v337 = vsub.f32 %v322, %v336
      %v338 = vmul.f32 %v337, %v337
      %v339 = vsel %vm325, %v338, 0.0
      %340 = vadd.xlane.f32.xlu0 %v339
      %v341 = vpop.xlane.xlu0 %340
      %v342 = vmul.f32 %v341, %v335
      %v343 = vadd.f32 %v342, 1e-05
      %v344 = vrsqrt.pop %v343
      %v345 = vmul.f32 %v344, %v343
      %v346 = vmul.f32 %v345, %v344
      %v347 = vmul.f32 0.5, %v346
      %v348 = vsub.f32 1.5, %v347
      %v349 = vmul.f32 %v344, %v348
      %vm350 = vweird.f32 %v343
      %vm351 = vweird.f32 %v344
      %vm352 = vmor %vm350, %vm351
      %v353 = vsel %vm352, %v344, %v349
      %v354 = vmul.f32 %v337, %v353
      %v356 = vperm.slane %v323, 0
      %v358 = vmul.f32 %v354, %v356
      %v360 = vperm.slane %v324, 0
      %v362 = vadd.f32 %v358, %v360
      %v363 = vpack.c.bf16 %v362, %v362
      %v364 = vld [vmem:[%s3] sm:$0xf]
      %v365 = vld [vmem:[%s3 + $0x4] sm:$0xf]
      %v366 = vld [vmem:[%s3 + $0x8] sm:$0xf]
      %v367 = vld [vmem:[%s3 + $0xc] sm:$0xf]
      %v372 = vunpack.c.l.b16 %v364
      %v373 = vunpack.c.l.b16 %v365
      %v374 = vunpack.c.l.b16 %v366
      %v375 = vunpack.c.l.b16 %v367
      %v376 = vpack.c.b16 %v373, %v372
      %v377 = vpack.c.b16 %v375, %v374
      %v381 = vsel %vm325, %v363, 0
      %383 = vmatpush.bf16.msra.mxu0 0
      %384 = vmatpush.bf16.msra.mxu0 0
      %385 = vmatpush.bf16.msra.mxu0 0
      %386 = vmatpush.bf16.msra.mxu0 0
      %387 = vmatpush.bf16.msra.mxu0 0
      %388 = vmatpush.bf16.msra.mxu0 0
      %389 = vmatpush.bf16.msra.mxu0 %v377
      %390 = vmatpush.bf16.msra.mxu0 %v376
      %391 = vmatmul.bf16.gmra.mxu0 %v381
      %v392 = vpop.f32.mrf.mxu0
      %v393 = vadd.f32 0.0, %v392
      %v394 = vpop.f32.mrf.mxu0
      %395 = vdwg.mxu0
      %v396 = vmul.f32 %v393, 0.35355338
      %v397 = vpack.c.bf16 %v396, %v396
      %v398 = vpack.c.bf16 %v393, %v393
      %400 = vrot.lane.b32.xlu0 %v398, 96
      %v401 = vpop.permute.xlu0 %400
      %403 = vxpose.xlu0.c.b16.start [1/8] %v401, 128
      %404 = vxpose.xlu0.c.b16.cont [2/8] 0, 128
      %405 = vxpose.xlu0.c.b16.cont [3/8] 0, 128
      %406 = vxpose.xlu0.c.b16.cont [4/8] 0, 128
      %407 = vxpose.xlu0.c.b16.cont [5/8] 0, 128
      %408 = vxpose.xlu0.c.b16.cont [6/8] 0, 128
      %409 = vxpose.xlu0.c.b16.cont [7/8] 0, 128
      %410 = vxpose.xlu0.c.b16.end [8/8] 0, 128
      %v411 = vpop.trf.xlu0
      %v412 = vpop.trf.xlu0
      %v413 = vpop.trf.xlu0
      %v414 = vpop.trf.xlu0
      %v415 = vpop.trf.xlu0
      %v416 = vpop.trf.xlu0
      %v417 = vpop.trf.xlu0
      %v418 = vpop.trf.xlu0
      %vm419 = vcmask 60416
      %420 = vst.msk [vmem:[%s304] sm:$0xf] %vm419, %v397
      %421 = vst.msk [vmem:[%s312] sm:$0xf] %vm419, %v411
      %422 = vrot.lane.b32.xlu0 %v398, 64
      %v423 = vpop.permute.xlu0 %422
      %425 = vst.msk [vmem:[%s320] sm:$0xf] %vm419, %v423
      %427 = vrot.lane.b32.xlu0 %v397, 120
      %v428 = vpop.permute.xlu0 %427
      %s430 = scalar_lea.vmem %s304, 4
      %431 = vst.msk [vmem:[%s430] sm:$0xf] %vm419, %v428
      %v433 = vunpack.c.h.b16 %v411
      %v434 = vpack.c.b16 %v433, %v433
      %s436 = scalar_lea.vmem %s312, 4
      %437 = vst.msk [vmem:[%s436] sm:$0xf] %vm419, %v434
      %438 = vrot.lane.b32.xlu0 %v398, 56
      %v439 = vpop.permute.xlu0 %438
      %s441 = scalar_lea.vmem %s320, 4
      %442 = vst.msk [vmem:[%s441] sm:$0xf] %vm419, %v439
      %443 = vrot.lane.b32.xlu0 %v397, 112
      %v444 = vpop.permute.xlu0 %443
      %s446 = scalar_lea.vmem %s304, 8
      %447 = vst.msk [vmem:[%s446] sm:$0xf] %vm419, %v444
      %s448 = scalar_lea.vmem %s312, 8
      %449 = vst.msk [vmem:[%s448] sm:$0xf] %vm419, %v412
      %450 = vrot.lane.b32.xlu0 %v398, 48
      %v451 = vpop.permute.xlu0 %450
      %s453 = scalar_lea.vmem %s320, 8
      %454 = vst.msk [vmem:[%s453] sm:$0xf] %vm419, %v451
      %455 = vrot.lane.b32.xlu0 %v397, 104
      %v456 = vpop.permute.xlu0 %455
      %s458 = scalar_lea.vmem %s304, 12
      %459 = vst.msk [vmem:[%s458] sm:$0xf] %vm419, %v456
      %v461 = vunpack.c.h.b16 %v412
      %v462 = vpack.c.b16 %v461, %v461
      %s464 = scalar_lea.vmem %s312, 12
      %465 = vst.msk [vmem:[%s464] sm:$0xf] %vm419, %v462
      %466 = vrot.lane.b32.xlu0 %v398, 40
      %v467 = vpop.permute.xlu0 %466
      %s469 = scalar_lea.vmem %s320, 12
      %470 = vst.msk [vmem:[%s469] sm:$0xf] %vm419, %v467
      %p471 = scmp.lt.s32.totalorder %s22, 1
      %s472 = scalar_select %p471, %s22, 1
      %p473 = scmp.lt.s32.totalorder %s23, 0
      %s474 = scalar_select %p473, %s23, 0
      %s475 = smul.addr %s472, 4
      %s476 = sadd.s32 %s474, %s475
      %s477 = smul.addr %s476, 4
      %s478 = scalar_lea.vmem %s4, %s477
      %p479 = scmp.lt.s32.totalorder %s22, 1
      %s480 = scalar_select %p479, %s22, 1
      %p481 = scmp.lt.s32.totalorder %s23, 0
      %s482 = scalar_select %p481, %s23, 0
      %s483 = smul.addr %s480, 4
      %s484 = sadd.s32 %s482, %s483
      %s485 = smul.addr %s484, 4
      %s486 = scalar_lea.vmem %s5, %s485
      %p487 = scmp.lt.s32.totalorder %s22, 1
      %s488 = scalar_select %p487, %s22, 1
      %p489 = scmp.lt.s32.totalorder %s23, 0
      %s490 = scalar_select %p489, %s23, 0
      %s491 = smul.addr %s488, 4
      %s492 = sadd.s32 %s490, %s491
      %s493 = smul.addr %s492, 4
      %s494 = scalar_lea.vmem %s6, %s493
      // Predicated region
      $region37: #{block_forward.2} parent=35 // pred_check
        %p495 = pneg %p141
      $region38: #{block_forward.2} parent=35 // pred_check_branch
        %497 = sbr.rel (%p495) target = $region40
      $region39: #{block_forward.2} parent=35 // pred_region
        _
      $region40: #{block_forward.2} parent=35 // pred_fallthru
        _
      // Predicated region
      $region41: #{block_forward.2} parent=35 // pred_check
        %p498 = pneg %p169
      $region42: #{block_forward.2} parent=35 // pred_check_branch
        %500 = sbr.rel (%p498) target = $region44
      $region43: #{block_forward.2} parent=35 // pred_region
        _
      $region44: #{block_forward.2} parent=35 // pred_fallthru
        _
      // Predicated region
      $region45: #{block_forward.2} parent=35 // pred_check
        %p501 = pneg %p197
      $region46: #{block_forward.2} parent=35 // pred_check_branch
        %503 = sbr.rel (%p501) target = $region48
      $region47: #{block_forward.2} parent=35 // pred_region
        _
      $region48: #{block_forward.2} parent=35 // pred_fallthru
        _
    $region36: #{block_forward.2} parent=5 // pred_fallthru
      _
    %p504 = scmp.le.s32.totalorder 2, %s13
    // Predicated region
    $region49: #{block_forward.2} parent=5 // pred_check
      %p505 = pneg %p504
    $region50: #{block_forward.2} parent=5 // pred_check_branch
      %507 = sbr.rel (%p505) target = $region52
    $region51: #{block_forward.2} parent=5 // pred_region
      %s508 = ssub.s32 %s13, 2
      // Predicated region
      $region53: #{block_forward.2} parent=51 // pred_check
        %p509 = pneg %p147
      $region54: #{block_forward.2} parent=51 // pred_check_branch
        %511 = sbr.rel (%p509) target = $region56
      $region55: #{block_forward.2} parent=51 // pred_region
        %p512 = scmp.lt.s32.totalorder %s24, 1
        %s513 = scalar_select %p512, %s24, 1
        %p514 = scmp.lt.s32.totalorder %s25, 0
        %s515 = scalar_select %p514, %s25, 0
        %s516 = smul.addr %s513, 4
        %s517 = sadd.s32 %s515, %s516
        %s518 = smul.addr %s517, 4
        %s519 = scalar_lea.vmem %s4, %s518
      $region56: #{block_forward.2} parent=51 // pred_fallthru
        _
      // Predicated region
      $region57: #{block_forward.2} parent=51 // pred_check
        %p520 = pneg %p175
      $region58: #{block_forward.2} parent=51 // pred_check_branch
        %522 = sbr.rel (%p520) target = $region60
      $region59: #{block_forward.2} parent=51 // pred_region
        %p523 = scmp.lt.s32.totalorder %s24, 1
        %s524 = scalar_select %p523, %s24, 1
        %p525 = scmp.lt.s32.totalorder %s25, 0
        %s526 = scalar_select %p525, %s25, 0
        %s527 = smul.addr %s524, 4
        %s528 = sadd.s32 %s526, %s527
        %s529 = smul.addr %s528, 4
        %s530 = scalar_lea.vmem %s5, %s529
      $region60: #{block_forward.2} parent=51 // pred_fallthru
        _
      // Predicated region
      $region61: #{block_forward.2} parent=51 // pred_check
        %p531 = pneg %p203
      $region62: #{block_forward.2} parent=51 // pred_check_branch
        %533 = sbr.rel (%p531) target = $region64
      $region63: #{block_forward.2} parent=51 // pred_region
        %p534 = scmp.lt.s32.totalorder %s24, 1
        %s535 = scalar_select %p534, %s24, 1
        %p536 = scmp.lt.s32.totalorder %s25, 0
        %s537 = scalar_select %p536, %s25, 0
        %s538 = smul.addr %s535, 4
        %s539 = sadd.s32 %s537, %s538
        %s540 = smul.addr %s539, 4
        %s541 = scalar_lea.vmem %s6, %s540
      $region64: #{block_forward.2} parent=51 // pred_fallthru
        _
    $region52: #{block_forward.2} parent=5 // pred_fallthru
      _
  $region6: #{block_forward.2} parent=0 // loop_footer
    %s17 = sadd.s32 1, %s13
  $region7: #{block_forward.2} parent=0 // loop_footer_branch
    %12 = sbr.rel target = $region3
  $region8: #{block_forward.2} parent=0 // loop_exit
    _

// kernel: block_forward.3
$region0: #{block_forward.3}
  #allocation0 [shape = 'u32[]', space=smem, size = 0x4, offset = 0x4, fixed_abs, tag = 'smem constant byte address 0x4 - core index']
  #allocation1 [shape = 'u32[72,128]{1,0:T(1,128)}', space=vmem, size = 0x9000, scoped, tag = 'internal scratch']
  #allocation2 [shape = 'f32[4,8,1]{2,1,0:T(8,128)}', space=vmem, size = 0x4000, scoped, tag = 'scratch operand']
  #allocation3 [shape = 'f32[4,8,1]{2,1,0:T(8,128)}', space=vmem, size = 0x4000, scoped, tag = 'scratch operand']
  #allocation4 [shape = 'f32[4,8,8]{2,1,0:T(8,128)}', space=vmem, size = 0x4000, scoped, tag = 'scratch operand']
  #allocation5 [shape = 'bf16[8,32]{1,0:T(8,128)(2,1)}', space=vmem, size = 0x800, scoped, tag = 'scratch operand']
  %s0 = inlined_call_operand.vmem [shape: f32[2,8,32], index: 0, kind: input, shape index: {}]
  %s1 = inlined_call_operand.vmem [shape: bf16[2,4,8,8], index: 1, kind: input, shape index: {}]
  %s2 = inlined_call_operand.vmem [shape: bf16[2,4,8,8], index: 2, kind: input, shape index: {}]
  %s3 = inlined_call_operand.vmem [shape: bf16[2,4,8,8], index: 3, kind: input, shape index: {}]
  %s4 = inlined_call_operand.vmem [shape: bf16[32,32], index: 4, kind: input, shape index: {}]
  %s5 = inlined_call_operand.vmem [shape: f32[1,32], index: 5, kind: input, shape index: {}]
  %s6 = inlined_call_operand.vmem [shape: f32[1,32], index: 6, kind: input, shape index: {}]
  %s7 = inlined_call_operand.vmem [shape: f32[1,32], index: 7, kind: input, shape index: {}]
  %s8 = inlined_call_operand.vmem [shape: bf16[32,128], index: 8, kind: input, shape index: {}]
  %s9 = inlined_call_operand.vmem [shape: f32[1,128], index: 9, kind: input, shape index: {}]
  %s10 = inlined_call_operand.vmem [shape: bf16[128,32], index: 10, kind: input, shape index: {}]
  %s11 = inlined_call_operand.vmem [shape: f32[1,32], index: 11, kind: input, shape index: {}]
  %s12 = inlined_call_operand.hbm [shape: f32[2,8,32], index: 12, kind: output, shape index: {}]
  %s13 = sld [smem:[#allocation0]]
  $region97: #{block_forward.3} parent=0
    _
  %s15 = ssub.s32 1, %s13
  %s16 = scalar_select 0, %s15, %s13
  $region1: #{block_forward.3} parent=0
    #allocation6 [shape = 'u8[8192]{0}', space=vmem, size = 0x2000, scoped, tag = 'output window, operand 0']
    #allocation7 [shape = 's32[2]{0}', space=sflag, size = 0x8, scoped, tag = 'scoped memory for block_forward.3']
    %17 = vsyncpa [#allocation7], 0
    %s18 = scalar_lea.sflag [#allocation7], 1
    %19 = vsyncpa %s18, 0
    loop: start=0, step=1, limit=4
    $region2: #{block_forward.3} parent=1 // loop_pre_header
      _
    $region3: #{block_forward.3} parent=1 // loop_header
      %s21 = sphi 0, %s25
      %p22 = scmp.ge.s32.totalorder %s21, 4
      %s28 = sphi 0, %s47
      %s29 = sphi 0, %s43
      %s30 = sphi 0, %s39
      %s31 = sphi 0, %s28
      %s32 = sphi 0, %s29
      %s33 = sphi 0, %s30
      %s34 = sphi 0, %s31
      %s35 = sphi 0, %s32
      %s36 = sphi 0, %s33
      %s52 = sphi 0, %s54
      %s55 = sphi 0, %s52
      %s56 = sphi 0, %s55
      %s72 = sphi 0, %s56
      %s80 = sphi 0, %s82
      %s83 = sphi 0, %s80
      %s84 = sphi 0, %s83
      %s100 = sphi 0, %s84
      %s112 = sphi 0, %s114
      %s115 = sphi 0, %s112
      %s116 = sphi 0, %s115
      %s132 = sphi 0, %s116
      %s144 = sphi 0, %s146
      %s147 = sphi 0, %s144
      %s148 = sphi 0, %s147
      %s164 = sphi 0, %s148
      %s168 = sphi 0, %s168
      %s170 = sphi 0, %s168
      %s171 = sphi 0, %s170
      %s185 = sphi 0, %s171
      %s189 = sphi 0, %s189
      %s191 = sphi 0, %s189
      %s192 = sphi 0, %s191
      %s206 = sphi 0, %s192
      %s210 = sphi 0, %s210
      %s212 = sphi 0, %s210
      %s213 = sphi 0, %s212
      %s227 = sphi 0, %s213
      %s231 = sphi 0, %s231
      %s233 = sphi 0, %s231
      %s234 = sphi 0, %s233
      %s248 = sphi 0, %s234
      %s252 = sphi 0, %s252
      %s254 = sphi 0, %s252
      %s255 = sphi 0, %s254
      %s269 = sphi 0, %s255
      %s273 = sphi 0, %s273
      %s275 = sphi 0, %s273
      %s276 = sphi 0, %s275
      %s290 = sphi 0, %s276
      %s294 = sphi 0, %s294
      %s296 = sphi 0, %s294
      %s297 = sphi 0, %s296
      %s311 = sphi 0, %s297
      %s315 = sphi 0, %s315
      %s317 = sphi 0, %s315
      %s318 = sphi 0, %s317
      %s332 = sphi 0, %s318
      %s340 = sphi 0, %s342
      %s343 = sphi 0, %s340
      %s344 = sphi 0, %s343
      %s360 = sphi 0, %s344
    $region4: #{block_forward.3} parent=1 // loop_header_branch
      %24 = sbr.rel (%p22) target = $region8
    $region5: #{block_forward.3} parent=1 // loop_body
      %s26 = ssub.s32 %s21, 1
      %s27 = ssub.s32 %s21, 2
      %s37 = sadd.s32 1, %s30
      %p38 = scmp.ge.s32.totalorder %s37, 1
      %s39 = scalar_select %p38, 0, %s37
      %s40 = sadd.s32 1, %s29
      %s41 = scalar_select %p38, %s40, %s29
      %p42 = scmp.ge.s32.totalorder %s41, 1
      %s43 = scalar_select %p42, 0, %s41
      %s44 = sadd.s32 1, %s28
      %s45 = scalar_select %p42, %s44, %s28
      %p46 = scmp.ge.s32.totalorder %s45, 2
      %s47 = scalar_select %p46, 0, %s45
      %s48 = ssub.s32 %s28, %s47
      %s49 = ssub.s32 %s29, %s43
      %s50 = sor.u32 %s48, %s49
      %p51 = scmp.eq.s32.totalorder %s50, 0
      %s53 = sadd.s32 %s52, 1
      %s54 = scalar_select %p51, %s52, %s53
      %p57 = pneg %p51
      %p58 = scmp.eq.s32.totalorder %s21, 1
      %p59 = por %p57, %p58
      %p60 = scmp.ne.s32.totalorder %s52, %s55
      %p61 = scmp.eq.s32.totalorder %s21, 0
      %p62 = por %p60, %p61
      %p63 = scmp.ne.s32.totalorder %s52, %s55
      %p64 = scmp.eq.s32.totalorder %s26, 1
      %p65 = por %p63, %p64
      %p66 = scmp.ne.s32.totalorder %s55, %s56
      %p67 = scmp.eq.s32.totalorder %s26, 0
      %p68 = por %p66, %p67
      %p69 = scmp.ne.s32.totalorder %s55, %s56
      %p70 = scmp.eq.s32.totalorder %s27, 1
      %p71 = por %p69, %p70
      %p73 = scmp.ne.s32.totalorder %s56, %s72
      %p74 = scmp.eq.s32.totalorder %s27, 0
      %p75 = por %p73, %p74
      %s76 = ssub.s32 %s28, %s47
      %s77 = ssub.s32 %s29, %s43
      %s78 = sor.u32 %s76, %s77
      %p79 = scmp.eq.s32.totalorder %s78, 0
      %s81 = sadd.s32 %s80, 1
      %s82 = scalar_select %p79, %s80, %s81
      %p85 = pneg %p79
      %p86 = scmp.eq.s32.totalorder %s21, 1
      %p87 = por %p85, %p86
      %p88 = scmp.ne.s32.totalorder %s80, %s83
      %p89 = scmp.eq.s32.totalorder %s21, 0
      %p90 = por %p88, %p89
      %p91 = scmp.ne.s32.totalorder %s80, %s83
      %p92 = scmp.eq.s32.totalorder %s26, 1
      %p93 = por %p91, %p92
      %p94 = scmp.ne.s32.totalorder %s83, %s84
      %p95 = scmp.eq.s32.totalorder %s26, 0
      %p96 = por %p94, %p95
      %p97 = scmp.ne.s32.totalorder %s83, %s84
      %p98 = scmp.eq.s32.totalorder %s27, 1
      %p99 = por %p97, %p98
      %p101 = scmp.ne.s32.totalorder %s84, %s100
      %p102 = scmp.eq.s32.totalorder %s27, 0
      %p103 = por %p101, %p102
      %p104 = scmp.lt.s32.totalorder %s30, %s29
      %s105 = scalar_select %p104, %s30, %s29
      %p106 = scmp.lt.s32.totalorder %s39, %s43
      %s107 = scalar_select %p106, %s39, %s43
      %s108 = ssub.s32 %s28, %s47
      %s109 = ssub.s32 %s105, %s107
      %s110 = sor.u32 %s108, %s109
      %p111 = scmp.eq.s32.totalorder %s110, 0
      %s113 = sadd.s32 %s112, 1
      %s114 = scalar_select %p111, %s112, %s113
      %p117 = pneg %p111
      %p118 = scmp.eq.s32.totalorder %s21, 1
      %p119 = por %p117, %p118
      %p120 = scmp.ne.s32.totalorder %s112, %s115
      %p121 = scmp.eq.s32.totalorder %s21, 0
      %p122 = por %p120, %p121
      %p123 = scmp.ne.s32.totalorder %s112, %s115
      %p124 = scmp.eq.s32.totalorder %s26, 1
      %p125 = por %p123, %p124
      %p126 = scmp.ne.s32.totalorder %s115, %s116
      %p127 = scmp.eq.s32.totalorder %s26, 0
      %p128 = por %p126, %p127
      %p129 = scmp.ne.s32.totalorder %s115, %s116
      %p130 = scmp.eq.s32.totalorder %s27, 1
      %p131 = por %p129, %p130
      %p133 = scmp.ne.s32.totalorder %s116, %s132
      %p134 = scmp.eq.s32.totalorder %s27, 0
      %p135 = por %p133, %p134
      %p136 = scmp.lt.s32.totalorder %s30, %s29
      %s137 = scalar_select %p136, %s30, %s29
      %p138 = scmp.lt.s32.totalorder %s39, %s43
      %s139 = scalar_select %p138, %s39, %s43
      %s140 = ssub.s32 %s28, %s47
      %s141 = ssub.s32 %s137, %s139
      %s142 = sor.u32 %s140, %s141
      %p143 = scmp.eq.s32.totalorder %s142, 0
      %s145 = sadd.s32 %s144, 1
      %s146 = scalar_select %p143, %s144, %s145
      %p149 = pneg %p143
      %p150 = scmp.eq.s32.totalorder %s21, 1
      %p151 = por %p149, %p150
      %p152 = scmp.ne.s32.totalorder %s144, %s147
      %p153 = scmp.eq.s32.totalorder %s21, 0
      %p154 = por %p152, %p153
      %p155 = scmp.ne.s32.totalorder %s144, %s147
      %p156 = scmp.eq.s32.totalorder %s26, 1
      %p157 = por %p155, %p156
      %p158 = scmp.ne.s32.totalorder %s147, %s148
      %p159 = scmp.eq.s32.totalorder %s26, 0
      %p160 = por %p158, %p159
      %p161 = scmp.ne.s32.totalorder %s147, %s148
      %p162 = scmp.eq.s32.totalorder %s27, 1
      %p163 = por %p161, %p162
      %p165 = scmp.ne.s32.totalorder %s148, %s164
      %p166 = scmp.eq.s32.totalorder %s27, 0
      %p167 = por %p165, %p166
      %s169 = sadd.s32 %s168, 1
      %p172 = scmp.eq.s32.totalorder %s21, 1
      %p173 = scmp.ne.s32.totalorder %s168, %s170
      %p174 = scmp.eq.s32.totalorder %s21, 0
      %p175 = por %p173, %p174
      %p176 = scmp.ne.s32.totalorder %s168, %s170
      %p177 = scmp.eq.s32.totalorder %s26, 1
      %p178 = por %p176, %p177
      %p179 = scmp.ne.s32.totalorder %s170, %s171
      %p180 = scmp.eq.s32.totalorder %s26, 0
      %p181 = por %p179, %p180
      %p182 = scmp.ne.s32.totalorder %s170, %s171
      %p183 = scmp.eq.s32.totalorder %s27, 1
      %p184 = por %p182, %p183
      %p186 = scmp.ne.s32.totalorder %s171, %s185
      %p187 = scmp.eq.s32.totalorder %s27, 0
      %p188 = por %p186, %p187
      %s190 = sadd.s32 %s189, 1
      %p193 = scmp.eq.s32.totalorder %s21, 1
      %p194 = scmp.ne.s32.totalorder %s189, %s191
      %p195 = scmp.eq.s32.totalorder %s21, 0
      %p196 = por %p194, %p195
      %p197 = scmp.ne.s32.totalorder %s189, %s191
      %p198 = scmp.eq.s32.totalorder %s26, 1
      %p199 = por %p197, %p198
      %p200 = scmp.ne.s32.totalorder %s191, %s192
      %p201 = scmp.eq.s32.totalorder %s26, 0
      %p202 = por %p200, %p201
      %p203 = scmp.ne.s32.totalorder %s191, %s192
      %p204 = scmp.eq.s32.totalorder %s27, 1
      %p205 = por %p203, %p204
      %p207 = scmp.ne.s32.totalorder %s192, %s206
      %p208 = scmp.eq.s32.totalorder %s27, 0
      %p209 = por %p207, %p208
      %s211 = sadd.s32 %s210, 1
      %p214 = scmp.eq.s32.totalorder %s21, 1
      %p215 = scmp.ne.s32.totalorder %s210, %s212
      %p216 = scmp.eq.s32.totalorder %s21, 0
      %p217 = por %p215, %p216
      %p218 = scmp.ne.s32.totalorder %s210, %s212
      %p219 = scmp.eq.s32.totalorder %s26, 1
      %p220 = por %p218, %p219
      %p221 = scmp.ne.s32.totalorder %s212, %s213
      %p222 = scmp.eq.s32.totalorder %s26, 0
      %p223 = por %p221, %p222
      %p224 = scmp.ne.s32.totalorder %s212, %s213
      %p225 = scmp.eq.s32.totalorder %s27, 1
      %p226 = por %p224, %p225
      %p228 = scmp.ne.s32.totalorder %s213, %s227
      %p229 = scmp.eq.s32.totalorder %s27, 0
      %p230 = por %p228, %p229
      %s232 = sadd.s32 %s231, 1
      %p235 = scmp.eq.s32.totalorder %s21, 1
      %p236 = scmp.ne.s32.totalorder %s231, %s233
      %p237 = scmp.eq.s32.totalorder %s21, 0
      %p238 = por %p236, %p237
      %p239 = scmp.ne.s32.totalorder %s231, %s233
      %p240 = scmp.eq.s32.totalorder %s26, 1
      %p241 = por %p239, %p240
      %p242 = scmp.ne.s32.totalorder %s233, %s234
      %p243 = scmp.eq.s32.totalorder %s26, 0
      %p244 = por %p242, %p243
      %p245 = scmp.ne.s32.totalorder %s233, %s234
      %p246 = scmp.eq.s32.totalorder %s27, 1
      %p247 = por %p245, %p246
      %p249 = scmp.ne.s32.totalorder %s234, %s248
      %p250 = scmp.eq.s32.totalorder %s27, 0
      %p251 = por %p249, %p250
      %s253 = sadd.s32 %s252, 1
      %p256 = scmp.eq.s32.totalorder %s21, 1
      %p257 = scmp.ne.s32.totalorder %s252, %s254
      %p258 = scmp.eq.s32.totalorder %s21, 0
      %p259 = por %p257, %p258
      %p260 = scmp.ne.s32.totalorder %s252, %s254
      %p261 = scmp.eq.s32.totalorder %s26, 1
      %p262 = por %p260, %p261
      %p263 = scmp.ne.s32.totalorder %s254, %s255
      %p264 = scmp.eq.s32.totalorder %s26, 0
      %p265 = por %p263, %p264
      %p266 = scmp.ne.s32.totalorder %s254, %s255
      %p267 = scmp.eq.s32.totalorder %s27, 1
      %p268 = por %p266, %p267
      %p270 = scmp.ne.s32.totalorder %s255, %s269
      %p271 = scmp.eq.s32.totalorder %s27, 0
      %p272 = por %p270, %p271
      %s274 = sadd.s32 %s273, 1
      %p277 = scmp.eq.s32.totalorder %s21, 1
      %p278 = scmp.ne.s32.totalorder %s273, %s275
      %p279 = scmp.eq.s32.totalorder %s21, 0
      %p280 = por %p278, %p279
      %p281 = scmp.ne.s32.totalorder %s273, %s275
      %p282 = scmp.eq.s32.totalorder %s26, 1
      %p283 = por %p281, %p282
      %p284 = scmp.ne.s32.totalorder %s275, %s276
      %p285 = scmp.eq.s32.totalorder %s26, 0
      %p286 = por %p284, %p285
      %p287 = scmp.ne.s32.totalorder %s275, %s276
      %p288 = scmp.eq.s32.totalorder %s27, 1
      %p289 = por %p287, %p288
      %p291 = scmp.ne.s32.totalorder %s276, %s290
      %p292 = scmp.eq.s32.totalorder %s27, 0
      %p293 = por %p291, %p292
      %s295 = sadd.s32 %s294, 1
      %p298 = scmp.eq.s32.totalorder %s21, 1
      %p299 = scmp.ne.s32.totalorder %s294, %s296
      %p300 = scmp.eq.s32.totalorder %s21, 0
      %p301 = por %p299, %p300
      %p302 = scmp.ne.s32.totalorder %s294, %s296
      %p303 = scmp.eq.s32.totalorder %s26, 1
      %p304 = por %p302, %p303
      %p305 = scmp.ne.s32.totalorder %s296, %s297
      %p306 = scmp.eq.s32.totalorder %s26, 0
      %p307 = por %p305, %p306
      %p308 = scmp.ne.s32.totalorder %s296, %s297
      %p309 = scmp.eq.s32.totalorder %s27, 1
      %p310 = por %p308, %p309
      %p312 = scmp.ne.s32.totalorder %s297, %s311
      %p313 = scmp.eq.s32.totalorder %s27, 0
      %p314 = por %p312, %p313
      %s316 = sadd.s32 %s315, 1
      %p319 = scmp.eq.s32.totalorder %s21, 1
      %p320 = scmp.ne.s32.totalorder %s315, %s317
      %p321 = scmp.eq.s32.totalorder %s21, 0
      %p322 = por %p320, %p321
      %p323 = scmp.ne.s32.totalorder %s315, %s317
      %p324 = scmp.eq.s32.totalorder %s26, 1
      %p325 = por %p323, %p324
      %p326 = scmp.ne.s32.totalorder %s317, %s318
      %p327 = scmp.eq.s32.totalorder %s26, 0
      %p328 = por %p326, %p327
      %p329 = scmp.ne.s32.totalorder %s317, %s318
      %p330 = scmp.eq.s32.totalorder %s27, 1
      %p331 = por %p329, %p330
      %p333 = scmp.ne.s32.totalorder %s318, %s332
      %p334 = scmp.eq.s32.totalorder %s27, 0
      %p335 = por %p333, %p334
      %s336 = ssub.s32 %s28, %s47
      %s337 = ssub.s32 %s29, %s43
      %s338 = sor.u32 %s336, %s337
      %p339 = scmp.eq.s32.totalorder %s338, 0
      %s341 = sadd.s32 %s340, 1
      %s342 = scalar_select %p339, %s340, %s341
      %p345 = pneg %p339
      %p346 = scmp.eq.s32.totalorder %s21, 1
      %p347 = por %p345, %p346
      %p348 = scmp.ne.s32.totalorder %s340, %s343
      %p349 = scmp.eq.s32.totalorder %s21, 0
      %p350 = por %p348, %p349
      %p351 = scmp.ne.s32.totalorder %s340, %s343
      %p352 = scmp.eq.s32.totalorder %s26, 1
      %p353 = por %p351, %p352
      %p354 = scmp.ne.s32.totalorder %s343, %s344
      %p355 = scmp.eq.s32.totalorder %s26, 0
      %p356 = por %p354, %p355
      %p357 = scmp.ne.s32.totalorder %s343, %s344
      %p358 = scmp.eq.s32.totalorder %s27, 1
      %p359 = por %p357, %p358
      %p361 = scmp.ne.s32.totalorder %s344, %s360
      %p362 = scmp.eq.s32.totalorder %s27, 0
      %p363 = por %p361, %p362
      %p364 = scmp.le.s32.totalorder 1, %s21
      %p365 = scmp.lt.s32.totalorder %s21, 3
      %p366 = pnand %p364, %p365
      %p367 = pneg %p366
      // Predicated region
      $region9: #{block_forward.3} parent=5 // pred_check
        _
      $region10: #{block_forward.3} parent=5 // pred_check_branch
        %369 = sbr.rel (%p366) target = $region12
      $region11: #{block_forward.3} parent=5 // pred_region
        %s370 = ssub.s32 %s21, 1
        // Predicated region
        $region13: #{block_forward.3} parent=11 // pred_check
          %p371 = pneg %p181
        $region14: #{block_forward.3} parent=11 // pred_check_branch
          %373 = sbr.rel (%p371) target = $region16
        $region15: #{block_forward.3} parent=11 // pred_region
          _
        $region16: #{block_forward.3} parent=11 // pred_fallthru
          _
        // Predicated region
        $region17: #{block_forward.3} parent=11 // pred_check
          %p374 = pneg %p202
        $region18: #{block_forward.3} parent=11 // pred_check_branch
          %376 = sbr.rel (%p374) target = $region20
        $region19: #{block_forward.3} parent=11 // pred_region
          _
        $region20: #{block_forward.3} parent=11 // pred_fallthru
          _
        // Predicated region
        $region21: #{block_forward.3} parent=11 // pred_check
          %p377 = pneg %p223
        $region22: #{block_forward.3} parent=11 // pred_check_branch
          %379 = sbr.rel (%p377) target = $region24
        $region23: #{block_forward.3} parent=11 // pred_region
          _
        $region24: #{block_forward.3} parent=11 // pred_fallthru
          _
        // Predicated region
        $region25: #{block_forward.3} parent=11 // pred_check
          %p380 = pneg %p244
        $region26: #{block_forward.3} parent=11 // pred_check_branch
          %382 = sbr.rel (%p380) target = $region28
        $region27: #{block_forward.3} parent=11 // pred_region
          _
        $region28: #{block_forward.3} parent=11 // pred_fallthru
          _
        // Predicated region
        $region29: #{block_forward.3} parent=11 // pred_check
          %p383 = pneg %p265
        $region30: #{block_forward.3} parent=11 // pred_check_branch
          %385 = sbr.rel (%p383) target = $region32
        $region31: #{block_forward.3} parent=11 // pred_region
          _
        $region32: #{block_forward.3} parent=11 // pred_fallthru
          _
        // Predicated region
        $region33: #{block_forward.3} parent=11 // pred_check
          %p386 = pneg %p286
        $region34: #{block_forward.3} parent=11 // pred_check_branch
          %388 = sbr.rel (%p386) target = $region36
        $region35: #{block_forward.3} parent=11 // pred_region
          _
        $region36: #{block_forward.3} parent=11 // pred_fallthru
          _
        // Predicated region
        $region37: #{block_forward.3} parent=11 // pred_check
          %p389 = pneg %p307
        $region38: #{block_forward.3} parent=11 // pred_check_branch
          %391 = sbr.rel (%p389) target = $region40
        $region39: #{block_forward.3} parent=11 // pred_region
          _
        $region40: #{block_forward.3} parent=11 // pred_fallthru
          _
        // Predicated region
        $region41: #{block_forward.3} parent=11 // pred_check
          %p392 = pneg %p328
        $region42: #{block_forward.3} parent=11 // pred_check_branch
          %394 = sbr.rel (%p392) target = $region44
        $region43: #{block_forward.3} parent=11 // pred_region
          _
        $region44: #{block_forward.3} parent=11 // pred_fallthru
          _
      $region12: #{block_forward.3} parent=5 // pred_fallthru
        _
      %p395 = scmp.lt.s32.totalorder %s21, 2
      // Predicated region
      $region45: #{block_forward.3} parent=5 // pred_check
        %p396 = pneg %p395
      $region46: #{block_forward.3} parent=5 // pred_check_branch
        %398 = sbr.rel (%p396) target = $region48
      $region47: #{block_forward.3} parent=5 // pred_region
        // Predicated region
        $region49: #{block_forward.3} parent=47 // pred_check
          %p399 = pneg %p62
        $region50: #{block_forward.3} parent=47 // pred_check_branch
          %401 = sbr.rel (%p399) target = $region52
        $region51: #{block_forward.3} parent=47 // pred_region
          %p402 = scmp.lt.s32.totalorder %s28, 1
          %s403 = scalar_select %p402, %s28, 1
          %p404 = scmp.lt.s32.totalorder %s29, 0
          %s405 = scalar_select %p404, %s29, 0
          %s406 = sadd.s32 %s405, %s403
          %s407 = smul.addr %s406, 8
          %s408 = scalar_lea.vmem %s0, %s407
        $region52: #{block_forward.3} parent=47 // pred_fallthru
          _
        // Predicated region
        $region53: #{block_forward.3} parent=47 // pred_check
          %p409 = pneg %p90
        $region54: #{block_forward.3} parent=47 // pred_check_branch
          %411 = sbr.rel (%p409) target = $region56
        $region55: #{block_forward.3} parent=47 // pred_region
          %p412 = scmp.lt.s32.totalorder %s28, 1
          %s413 = scalar_select %p412, %s28, 1
          %p414 = scmp.lt.s32.totalorder %s29, 0
          %s415 = scalar_select %p414, %s29, 0
          %s416 = smul.addr %s413, 4
          %s417 = sadd.s32 %s415, %s416
          %s418 = smul.addr %s417, 4
          %s419 = scalar_lea.vmem %s1, %s418
        $region56: #{block_forward.3} parent=47 // pred_fallthru
          _
        // Predicated region
        $region57: #{block_forward.3} parent=47 // pred_check
          %p420 = pneg %p122
        $region58: #{block_forward.3} parent=47 // pred_check_branch
          %422 = sbr.rel (%p420) target = $region60
        $region59: #{block_forward.3} parent=47 // pred_region
          %p423 = scmp.lt.s32.totalorder %s30, %s29
          %s424 = scalar_select %p423, %s30, %s29
          %p425 = scmp.lt.s32.totalorder %s28, 1
          %s426 = scalar_select %p425, %s28, 1
          %p427 = scmp.lt.s32.totalorder %s424, 0
          %s428 = scalar_select %p427, %s424, 0
          %s429 = smul.addr %s426, 4
          %s430 = sadd.s32 %s428, %s429
          %s431 = smul.addr %s430, 4
          %s432 = scalar_lea.vmem %s2, %s431
          %p433 = scmp.lt.s32.totalorder %s30, %s29
          %s434 = scalar_select %p433, %s30, %s29
        $region60: #{block_forward.3} parent=47 // pred_fallthru
          _
        // Predicated region
        $region61: #{block_forward.3} parent=47 // pred_check
          %p435 = pneg %p154
        $region62: #{block_forward.3} parent=47 // pred_check_branch
          %437 = sbr.rel (%p435) target = $region64
        $region63: #{block_forward.3} parent=47 // pred_region
          %p438 = scmp.lt.s32.totalorder %s30, %s29
          %s439 = scalar_select %p438, %s30, %s29
          %p440 = scmp.lt.s32.totalorder %s28, 1
          %s441 = scalar_select %p440, %s28, 1
          %p442 = scmp.lt.s32.totalorder %s439, 0
          %s443 = scalar_select %p442, %s439, 0
          %s444 = smul.addr %s441, 4
          %s445 = sadd.s32 %s443, %s444
          %s446 = smul.addr %s445, 4
          %s447 = scalar_lea.vmem %s3, %s446
          %p448 = scmp.lt.s32.totalorder %s30, %s29
          %s449 = scalar_select %p448, %s30, %s29
        $region64: #{block_forward.3} parent=47 // pred_fallthru
          _
      $region48: #{block_forward.3} parent=5 // pred_fallthru
        _
      %p450 = scmp.le.s32.totalorder 1, %s21
      %p451 = scmp.lt.s32.totalorder %s21, 3
      %p452 = pnand %p450, %p451
      %p453 = pneg %p452
      // Predicated region
      $region65: #{block_forward.3} parent=5 // pred_check
        _
      $region66: #{block_forward.3} parent=5 // pred_check_branch
        %455 = sbr.rel (%p452) target = $region68
      $region67: #{block_forward.3} parent=5 // pred_region
        %s456 = ssub.s32 %s21, 1
        %p457 = scmp.lt.s32.totalorder %s31, 1
        %s458 = scalar_select %p457, %s31, 1
        %p459 = scmp.lt.s32.totalorder %s32, 0
        %s460 = scalar_select %p459, %s32, 0
        %s461 = sadd.s32 %s460, %s458
        %s462 = smul.addr %s461, 8
        %s463 = scalar_lea.vmem %s0, %s462
        %p464 = pneg %p68
        %p465 = pneg %p65
        %p466 = scmp.lt.s32.totalorder %s31, 1
        %s467 = scalar_select %p466, %s31, 1
        %p468 = scmp.lt.s32.totalorder %s32, 0
        %s469 = scalar_select %p468, %s32, 0
        %s470 = smul.addr %s467, 4
        %s471 = sadd.s32 %s469, %s470
        %s472 = smul.addr %s471, 4
        %s473 = scalar_lea.vmem %s1, %s472
        %p474 = pneg %p96
        %p475 = pneg %p93
        %p476 = scmp.lt.s32.totalorder %s33, %s32
        %s477 = scalar_select %p476, %s33, %s32
        %p478 = scmp.lt.s32.totalorder %s31, 1
        %s479 = scalar_select %p478, %s31, 1
        %p480 = scmp.lt.s32.totalorder %s477, 0
        %s481 = scalar_select %p480, %s477, 0
        %s482 = smul.addr %s479, 4
        %s483 = sadd.s32 %s481, %s482
        %s484 = smul.addr %s483, 4
        %s485 = scalar_lea.vmem %s2, %s484
        %p486 = pneg %p128
        %p487 = pneg %p125
        %p488 = scmp.lt.s32.totalorder %s33, %s32
        %s489 = scalar_select %p488, %s33, %s32
        %p490 = scmp.lt.s32.totalorder %s31, 1
        %s491 = scalar_select %p490, %s31, 1
        %p492 = scmp.lt.s32.totalorder %s489, 0
        %s493 = scalar_select %p492, %s489, 0
        %s494 = smul.addr %s491, 4
        %s495 = sadd.s32 %s493, %s494
        %s496 = smul.addr %s495, 4
        %s497 = scalar_lea.vmem %s3, %s496
        %p498 = pneg %p160
        %p499 = pneg %p157
        %p500 = pneg %p181
        %p501 = pneg %p178
        %p502 = pneg %p202
        %p503 = pneg %p199
        %p504 = pneg %p223
        %p505 = pneg %p220
        %p506 = pneg %p244
        %p507 = pneg %p241
        %p508 = pneg %p265
        %p509 = pneg %p262
        %p510 = pneg %p286
        %p511 = pneg %p283
        %p512 = pneg %p307
        %p513 = pneg %p304
        %p514 = pneg %p328
        %p515 = pneg %p325
        %p516 = pneg %p356
        %p517 = pneg %p353
        %s518 = sand.u32 %s343, 1
        %s519 = scalar_lea.sflag [#allocation7], %s518
        %s520 = sand.u32 %s343, 1
        %s521 = smul.addr %s520, 8
        %s522 = scalar_lea.vmem [#allocation6], %s521
        %p523 = scmp.lt.s32.totalorder %s31, 1
        %s524 = scalar_select %p523, %s31, 1
        %p525 = scmp.lt.s32.totalorder %s32, 0
        %s526 = scalar_select %p525, %s32, 0
        %s527 = sadd.s32 %s526, %s524
        %s528 = smul.addr %s527, 8
        %s529 = scalar_lea.vmem %s0, %s528
        %p530 = scmp.lt.s32.totalorder %s31, 1
        %s531 = scalar_select %p530, %s31, 1
        %p532 = scmp.lt.s32.totalorder %s32, 0
        %s533 = scalar_select %p532, %s32, 0
        %s534 = smul.addr %s531, 4
        %s535 = sadd.s32 %s533, %s534
        %s536 = smul.addr %s535, 4
        %s537 = scalar_lea.vmem %s1, %s536
        %p538 = scmp.lt.s32.totalorder %s33, %s32
        %s539 = scalar_select %p538, %s33, %s32
        %p540 = scmp.lt.s32.totalorder %s31, 1
        %s541 = scalar_select %p540, %s31, 1
        %p542 = scmp.lt.s32.totalorder %s539, 0
        %s543 = scalar_select %p542, %s539, 0
        %s544 = smul.addr %s541, 4
        %s545 = sadd.s32 %s543, %s544
        %s546 = smul.addr %s545, 4
        %s547 = scalar_lea.vmem %s2, %s546
        %p548 = scmp.lt.s32.totalorder %s33, %s32
        %s549 = scalar_select %p548, %s33, %s32
        %p550 = scmp.lt.s32.totalorder %s33, %s32
        %s551 = scalar_select %p550, %s33, %s32
        %p552 = scmp.lt.s32.totalorder %s31, 1
        %s553 = scalar_select %p552, %s31, 1
        %p554 = scmp.lt.s32.totalorder %s551, 0
        %s555 = scalar_select %p554, %s551, 0
        %s556 = smul.addr %s553, 4
        %s557 = sadd.s32 %s555, %s556
        %s558 = smul.addr %s557, 4
        %s559 = scalar_lea.vmem %s3, %s558
        %p560 = scmp.lt.s32.totalorder %s33, %s32
        %s561 = scalar_select %p560, %s33, %s32
        %p563 = scmp.eq.s32.totalorder %s33, 0
        // Predicated region
        $region69: #{block_forward.3} parent=67 // pred_check
          %p564 = pneg %p563
        $region70: #{block_forward.3} parent=67 // pred_check_branch
          %566 = sbr.rel (%p564) target = $region72
        $region71: #{block_forward.3} parent=67 // pred_region
          %vm567 = vcmask 7168
          %568 = vst.msk [vmem:[#allocation2] sm:$0xff] %vm567, -1e+30
          %569 = vst.msk [vmem:[#allocation2 + $0x8] sm:$0xff] %vm567, -1e+30
          %570 = vst.msk [vmem:[#allocation2 + $0x10] sm:$0xff] %vm567, -1e+30
          %571 = vst.msk [vmem:[#allocation2 + $0x18] sm:$0xff] %vm567, -1e+30
          %572 = vst.msk [vmem:[#allocation3] sm:$0xff] %vm567, 0.0
          %573 = vst.msk [vmem:[#allocation3 + $0x8] sm:$0xff] %vm567, 0.0
          %574 = vst.msk [vmem:[#allocation3 + $0x10] sm:$0xff] %vm567, 0.0
          %575 = vst.msk [vmem:[#allocation3 + $0x18] sm:$0xff] %vm567, 0.0
          %vm576 = vcmask 64512
          %577 = vst.msk [vmem:[#allocation4] sm:$0xff] %vm576, 0.0
          %578 = vst.msk [vmem:[#allocation4 + $0x8] sm:$0xff] %vm576, 0.0
          %579 = vst.msk [vmem:[#allocation4 + $0x10] sm:$0xff] %vm576, 0.0
          %580 = vst.msk [vmem:[#allocation4 + $0x18] sm:$0xff] %vm576, 0.0
        $region72: #{block_forward.3} parent=67 // pred_fallthru
          _
        %p581 = scmp.lt.s32.totalorder %s33, %s32
        // Predicated region
        $region73: #{block_forward.3} parent=67 // pred_check
          %p582 = pneg %p581
        $region74: #{block_forward.3} parent=67 // pred_check_branch
          %584 = sbr.rel (%p582) target = $region76
        $region75: #{block_forward.3} parent=67 // pred_region
          %v585 = vld [vmem:[%s537] sm:$0xf]
          %v586 = vld [vmem:[%s537 + $0x4] sm:$0xf]
          %v587 = vld [vmem:[%s537 + $0x8] sm:$0xf]
          %v588 = vld [vmem:[%s537 + $0xc] sm:$0xf]
          %v589 = vld [vmem:[%s547] sm:$0xf]
          %v590 = vld [vmem:[%s547 + $0x4] sm:$0xf]
          %v591 = vld [vmem:[%s547 + $0x8] sm:$0xf]
          %v592 = vld [vmem:[%s547 + $0xc] sm:$0xf]
          %v593 = vld [vmem:[%s559] sm:$0xf]
          %v594 = vld [vmem:[%s559 + $0x4] sm:$0xf]
          %v595 = vld [vmem:[%s559 + $0x8] sm:$0xf]
          %v596 = vld [vmem:[%s559 + $0xc] sm:$0xf]
          %vm597 = vcmask 64512
          %v599 = vsel %vm597, %v585, 0
          %vm601 = vcmask 1043456
          %v603 = vsel %vm601, %v589, 0
          %605 = vmatpush.bf16.msra.mxu0 0
          %606 = vmatpush.bf16.msra.mxu0 0
          %607 = vmatpush.bf16.msra.mxu0 0
          %608 = vmatpush.bf16.msra.mxu0 0
          %609 = vmatpush.bf16.msra.mxu0 0
          %610 = vmatpush.bf16.msra.mxu0 0
          %611 = vmatpush.bf16.msra.mxu0 0
          %612 = vmatpush.bf16.msra.mxu0 %v603
          %613 = vmatmul.bf16.gmra.mxu0 %v599
          %v614 = vpop.f32.mrf.mxu0
          %v615 = vadd.f32 0.0, %v614
          %v616 = vpop.f32.mrf.mxu0
          %617 = vdwg.mxu0
          %v619 = vsel %vm597, %v586, 0
          %v622 = vsel %vm601, %v590, 0
          %624 = vmatpush.bf16.msra.mxu0 0
          %625 = vmatpush.bf16.msra.mxu0 0
          %626 = vmatpush.bf16.msra.mxu0 0
          %627 = vmatpush.bf16.msra.mxu0 0
          %628 = vmatpush.bf16.msra.mxu0 0
          %629 = vmatpush.bf16.msra.mxu0 0
          %630 = vmatpush.bf16.msra.mxu0 0
          %631 = vmatpush.bf16.msra.mxu0 %v622
          %632 = vmatmul.bf16.gmra.mxu0 %v619
          %v633 = vpop.f32.mrf.mxu0
          %v634 = vadd.f32 0.0, %v633
          %v635 = vpop.f32.mrf.mxu0
          %636 = vdwg.mxu0
          %v638 = vsel %vm597, %v587, 0
          %v641 = vsel %vm601, %v591, 0
          %643 = vmatpush.bf16.msra.mxu0 0
          %644 = vmatpush.bf16.msra.mxu0 0
          %645 = vmatpush.bf16.msra.mxu0 0
          %646 = vmatpush.bf16.msra.mxu0 0
          %647 = vmatpush.bf16.msra.mxu0 0
          %648 = vmatpush.bf16.msra.mxu0 0
          %649 = vmatpush.bf16.msra.mxu0 0
          %650 = vmatpush.bf16.msra.mxu0 %v641
          %651 = vmatmul.bf16.gmra.mxu0 %v638
          %v652 = vpop.f32.mrf.mxu0
          %v653 = vadd.f32 0.0, %v652
          %v654 = vpop.f32.mrf.mxu0
          %655 = vdwg.mxu0
          %v657 = vsel %vm597, %v588, 0
          %v660 = vsel %vm601, %v592, 0
          %662 = vmatpush.bf16.msra.mxu0 0
          %663 = vmatpush.bf16.msra.mxu0 0
          %664 = vmatpush.bf16.msra.mxu0 0
          %665 = vmatpush.bf16.msra.mxu0 0
          %666 = vmatpush.bf16.msra.mxu0 0
          %667 = vmatpush.bf16.msra.mxu0 0
          %668 = vmatpush.bf16.msra.mxu0 0
          %669 = vmatpush.bf16.msra.mxu0 %v660
          %670 = vmatmul.bf16.gmra.mxu0 %v657
          %v671 = vpop.f32.mrf.mxu0
          %v672 = vadd.f32 0.0, %v671
          %v673 = vpop.f32.mrf.mxu0
          %674 = vdwg.mxu0
          %v675 = vld [vmem:[#allocation2] sm:$0xff]
          %v676 = vld [vmem:[#allocation2 + $0x8] sm:$0xff]
          %v677 = vld [vmem:[#allocation2 + $0x10] sm:$0xff]
          %v678 = vld [vmem:[#allocation2 + $0x18] sm:$0xff]
          %v679 = vsel %vm597, %v615, -inf
          %680 = vmax.xlane.f32.xlu0 %v679
          %v681 = vpop.xlane.xlu0 %680
          %v682 = vsel %vm597, %v634, -inf
          %683 = vmax.xlane.f32.xlu0 %v682
          %v684 = vpop.xlane.xlu0 %683
          %v685 = vsel %vm597, %v653, -inf
          %686 = vmax.xlane.f32.xlu0 %v685
          %v687 = vpop.xlane.xlu0 %686
          %v688 = vsel %vm597, %v672, -inf
          %689 = vmax.xlane.f32.xlu0 %v688
          %v690 = vpop.xlane.xlu0 %689
          %v691 = vmax.f32 %v675, %v681
          %v692 = vmax.f32 %v676, %v684
          %v693 = vmax.f32 %v677, %v687
          %v694 = vmax.f32 %v678, %v690
          %v695 = vsub.f32 %v675, %v691
          %v696 = vsub.f32 %v676, %v692
          %v697 = vsub.f32 %v677, %v693
          %v698 = vsub.f32 %v678, %v694
          %v699 = vmul.f32 %v695, 1.442695
          %v700 = vpow.pop %v699
          %v701 = vmul.f32 %v696, 1.442695
          %v702 = vpow.pop %v701
          %v703 = vmul.f32 %v697, 1.442695
          %v704 = vpow.pop %v703
          %v705 = vmul.f32 %v698, 1.442695
          %v706 = vpow.pop %v705
          %708 = vset.pattern.permute.xlu0 0
          %709 = vperm.xlu0 %708, %v691
          %v710 = vpop.permute.xlu0 %709
          %713 = vset.pattern.permute.xlu0 0
          %714 = vperm.xlu0 %713, %v692
          %v715 = vpop.permute.xlu0 %714
          %718 = vset.pattern.permute.xlu0 0
          %719 = vperm.xlu0 %718, %v693
          %v720 = vpop.permute.xlu0 %719
          %723 = vset.pattern.permute.xlu0 0
          %724 = vperm.xlu0 %723, %v694
          %v725 = vpop.permute.xlu0 %724
          %v727 = vsub.f32 %v615, %v710
          %v728 = vsub.f32 %v634, %v715
          %v729 = vsub.f32 %v653, %v720
          %v730 = vsub.f32 %v672, %v725
          %v731 = vpack.c.bf16 %v727, %v727
          %v732 = vpack.c.bf16 %v728, %v728
          %v733 = vpack.c.bf16 %v729, %v729
          %v734 = vpack.c.bf16 %v730, %v730
          %v735 = vunpack.c.l.bf16 %v731
          %v736 = vunpack.c.l.bf16 %v732
          %v737 = vunpack.c.l.bf16 %v733
          %v738 = vunpack.c.l.bf16 %v734
          %v739 = vmul.f32 %v735, 1.442695
          %v740 = vpow.pop %v739
          %v741 = vmul.f32 %v736, 1.442695
          %v742 = vpow.pop %v741
          %v743 = vmul.f32 %v737, 1.442695
          %v744 = vpow.pop %v743
          %v745 = vmul.f32 %v738, 1.442695
          %v746 = vpow.pop %v745
          %v747 = vpack.c.bf16 %v740, %v740
          %v748 = vpack.c.bf16 %v742, %v742
          %v749 = vpack.c.bf16 %v744, %v744
          %v750 = vpack.c.bf16 %v746, %v746
          %v751 = vld [vmem:[#allocation3] sm:$0xff]
          %v752 = vld [vmem:[#allocation3 + $0x8] sm:$0xff]
          %v753 = vld [vmem:[#allocation3 + $0x10] sm:$0xff]
          %v754 = vld [vmem:[#allocation3 + $0x18] sm:$0xff]
          %v755 = vmul.f32 %v700, %v751
          %v756 = vmul.f32 %v702, %v752
          %v757 = vmul.f32 %v704, %v753
          %v758 = vmul.f32 %v706, %v754
          %v759 = vunpack.c.l.bf16 %v747
          %v760 = vunpack.c.l.bf16 %v748
          %v761 = vunpack.c.l.bf16 %v749
          %v762 = vunpack.c.l.bf16 %v750
          %v763 = vsel %vm597, %v759, 0.0
          %764 = vadd.xlane.f32.xlu0 %v763
          %v765 = vpop.xlane.xlu0 %764
          %v766 = vsel %vm597, %v760, 0.0
          %767 = vadd.xlane.f32.xlu0 %v766
          %v768 = vpop.xlane.xlu0 %767
          %v769 = vsel %vm597, %v761, 0.0
          %770 = vadd.xlane.f32.xlu0 %v769
          %v771 = vpop.xlane.xlu0 %770
          %v772 = vsel %vm597, %v762, 0.0
          %773 = vadd.xlane.f32.xlu0 %v772
          %v774 = vpop.xlane.xlu0 %773
          %v775 = vadd.f32 %v755, %v765
          %v776 = vadd.f32 %v756, %v768
          %v777 = vadd.f32 %v757, %v771
          %v778 = vadd.f32 %v758, %v774
          %vm779 = vcmask 7168
          %780 = vst.msk [vmem:[#allocation3] sm:$0xff] %vm779, %v775
          %781 = vst.msk [vmem:[#allocation3 + $0x8] sm:$0xff] %vm779, %v776
          %782 = vst.msk [vmem:[#allocation3 + $0x10] sm:$0xff] %vm779, %v777
          %783 = vst.msk [vmem:[#allocation3 + $0x18] sm:$0xff] %vm779, %v778
          %v784 = vld [vmem:[#allocation4] sm:$0xff]
          %v785 = vld [vmem:[#allocation4 + $0x8] sm:$0xff]
          %v786 = vld [vmem:[#allocation4 + $0x10] sm:$0xff]
          %v787 = vld [vmem:[#allocation4 + $0x18] sm:$0xff]
          %789 = vset.pattern.permute.xlu0 0
          %790 = vperm.xlu0 %789, %v700
          %v791 = vpop.permute.xlu0 %790
          %794 = vset.pattern.permute.xlu0 0
          %795 = vperm.xlu0 %794, %v702
          %v796 = vpop.permute.xlu0 %795
          %799 = vset.pattern.permute.xlu0 0
          %800 = vperm.xlu0 %799, %v704
          %v801 = vpop.permute.xlu0 %800
          %804 = vset.pattern.permute.xlu0 0
          %805 = vperm.xlu0 %804, %v706
          %v806 = vpop.permute.xlu0 %805
          %v808 = vmul.f32 %v791, %v784
          %v809 = vmul.f32 %v796, %v785
          %v810 = vmul.f32 %v801, %v786
          %v811 = vmul.f32 %v806, %v787
          %v813 = vsel %vm597, %v747, 0
          %v816 = vsel %vm601, %v593, 0
          %818 = vmatpush.bf16.msra.mxu0 0
          %819 = vmatpush.bf16.msra.mxu0 0
          %820 = vmatpush.bf16.msra.mxu0 0
          %821 = vmatpush.bf16.msra.mxu0 0
          %822 = vmatpush.bf16.msra.mxu0 0
          %823 = vmatpush.bf16.msra.mxu0 0
          %824 = vmatpush.bf16.msra.mxu0 0
          %825 = vmatpush.bf16.msra.mxu0 %v816
          %826 = vmatmul.bf16.gmra.mxu0 %v813
          %v827 = vpop.f32.mrf.mxu0
          %v828 = vadd.f32 0.0, %v827
          %v829 = vpop.f32.mrf.mxu0
          %830 = vdwg.mxu0
          %v832 = vsel %vm597, %v748, 0
          %v835 = vsel %vm601, %v594, 0
          %837 = vmatpush.bf16.msra.mxu0 0
          %838 = vmatpush.bf16.msra.mxu0 0
          %839 = vmatpush.bf16.msra.mxu0 0
          %840 = vmatpush.bf16.msra.mxu0 0
          %841 = vmatpush.bf16.msra.mxu0 0
          %842 = vmatpush.bf16.msra.mxu0 0
          %843 = vmatpush.bf16.msra.mxu0 0
          %844 = vmatpush.bf16.msra.mxu0 %v835
          %845 = vmatmul.bf16.gmra.mxu0 %v832
          %v846 = vpop.f32.mrf.mxu0
          %v847 = vadd.f32 0.0, %v846
          %v848 = vpop.f32.mrf.mxu0
          %849 = vdwg.mxu0
          %v851 = vsel %vm597, %v749, 0
          %v854 = vsel %vm601, %v595, 0
          %856 = vmatpush.bf16.msra.mxu0 0
          %857 = vmatpush.bf16.msra.mxu0 0
          %858 = vmatpush.bf16.msra.mxu0 0
          %859 = vmatpush.bf16.msra.mxu0 0
          %860 = vmatpush.bf16.msra.mxu0 0
          %861 = vmatpush.bf16.msra.mxu0 0
          %862 = vmatpush.bf16.msra.mxu0 0
          %863 = vmatpush.bf16.msra.mxu0 %v854
          %864 = vmatmul.bf16.gmra.mxu0 %v851
          %v865 = vpop.f32.mrf.mxu0
          %v866 = vadd.f32 0.0, %v865
          %v867 = vpop.f32.mrf.mxu0
          %868 = vdwg.mxu0
          %v870 = vsel %vm597, %v750, 0
          %v873 = vsel %vm601, %v596, 0
          %875 = vmatpush.bf16.msra.mxu0 0
          %876 = vmatpush.bf16.msra.mxu0 0
          %877 = vmatpush.bf16.msra.mxu0 0
          %878 = vmatpush.bf16.msra.mxu0 0
          %879 = vmatpush.bf16.msra.mxu0 0
          %880 = vmatpush.bf16.msra.mxu0 0
          %881 = vmatpush.bf16.msra.mxu0 0
          %882 = vmatpush.bf16.msra.mxu0 %v873
          %883 = vmatmul.bf16.gmra.mxu0 %v870
          %v884 = vpop.f32.mrf.mxu0
          %v885 = vadd.f32 0.0, %v884
          %v886 = vpop.f32.mrf.mxu0
          %887 = vdwg.mxu0
          %v888 = vadd.f32 %v808, %v828
          %v889 = vadd.f32 %v809, %v847
          %v890 = vadd.f32 %v810, %v866
          %v891 = vadd.f32 %v811, %v885
          %892 = vst.msk [vmem:[#allocation4] sm:$0xff] %vm597, %v888
          %893 = vst.msk [vmem:[#allocation4 + $0x8] sm:$0xff] %vm597, %v889
          %894 = vst.msk [vmem:[#allocation4 + $0x10] sm:$0xff] %vm597, %v890
          %895 = vst.msk [vmem:[#allocation4 + $0x18] sm:$0xff] %vm597, %v891
          %896 = vst.msk [vmem:[#allocation2] sm:$0xff] %vm779, %v691
          %897 = vst.msk [vmem:[#allocation2 + $0x8] sm:$0xff] %vm779, %v692
          %898 = vst.msk [vmem:[#allocation2 + $0x10] sm:$0xff] %vm779, %v693
          %899 = vst.msk [vmem:[#allocation2 + $0x18] sm:$0xff] %vm779, %v694
        $region76: #{block_forward.3} parent=67 // pred_fallthru
          _
        %p900 = scmp.ge.s32.totalorder %s33, %s32
        %p901 = scmp.le.s32.totalorder %s33, %s32
        %p902 = pnand %p900, %p901
        %p903 = pneg %p902
        // Predicated region
        $region77: #{block_forward.3} parent=67 // pred_check
          _
        $region78: #{block_forward.3} parent=67 // pred_check_branch
          %905 = sbr.rel (%p902) target = $region80
        $region79: #{block_forward.3} parent=67 // pred_region
          %v906 = vld [vmem:[%s537] sm:$0xf]
          %v907 = vld [vmem:[%s537 + $0x4] sm:$0xf]
          %v908 = vld [vmem:[%s537 + $0x8] sm:$0xf]
          %v909 = vld [vmem:[%s537 + $0xc] sm:$0xf]
          %v910 = vld [vmem:[%s547] sm:$0xf]
          %v911 = vld [vmem:[%s547 + $0x4] sm:$0xf]
          %v912 = vld [vmem:[%s547 + $0x8] sm:$0xf]
          %v913 = vld [vmem:[%s547 + $0xc] sm:$0xf]
          %v914 = vld [vmem:[%s559] sm:$0xf]
          %v915 = vld [vmem:[%s559 + $0x4] sm:$0xf]
          %v916 = vld [vmem:[%s559 + $0x8] sm:$0xf]
          %v917 = vld [vmem:[%s559 + $0xc] sm:$0xf]
          %vm918 = vcmask 64512
          %v920 = vsel %vm918, %v906, 0
          %vm922 = vcmask 1043456
          %v924 = vsel %vm922, %v910, 0
          %926 = vmatpush.bf16.msra.mxu0 0
          %927 = vmatpush.bf16.msra.mxu0 0
          %928 = vmatpush.bf16.msra.mxu0 0
          %929 = vmatpush.bf16.msra.mxu0 0
          %930 = vmatpush.bf16.msra.mxu0 0
          %931 = vmatpush.bf16.msra.mxu0 0
          %932 = vmatpush.bf16.msra.mxu0 0
          %933 = vmatpush.bf16.msra.mxu0 %v924
          %934 = vmatmul.bf16.gmra.mxu0 %v920
          %v935 = vpop.f32.mrf.mxu0
          %v936 = vadd.f32 0.0, %v935
          %v937 = vpop.f32.mrf.mxu0
          %938 = vdwg.mxu0
          %v940 = vsel %vm918, %v907, 0
          %v943 = vsel %vm922, %v911, 0
          %945 = vmatpush.bf16.msra.mxu0 0
          %946 = vmatpush.bf16.msra.mxu0 0
          %947 = vmatpush.bf16.msra.mxu0 0
          %948 = vmatpush.bf16.msra.mxu0 0
          %949 = vmatpush.bf16.msra.mxu0 0
          %950 = vmatpush.bf16.msra.mxu0 0
          %951 = vmatpush.bf16.msra.mxu0 0
          %952 = vmatpush.bf16.msra.mxu0 %v943
          %953 = vmatmul.bf16.gmra.mxu0 %v940
          %v954 = vpop.f32.mrf.mxu0
          %v955 = vadd.f32 0.0, %v954
          %v956 = vpop.f32.mrf.mxu0
          %957 = vdwg.mxu0
          %v959 = vsel %vm918, %v908, 0
          %v962 = vsel %vm922, %v912, 0
          %964 = vmatpush.bf16.msra.mxu0 0
          %965 = vmatpush.bf16.msra.mxu0 0
          %966 = vmatpush.bf16.msra.mxu0 0
          %967 = vmatpush.bf16.msra.mxu0 0
          %968 = vmatpush.bf16.msra.mxu0 0
          %969 = vmatpush.bf16.msra.mxu0 0
          %970 = vmatpush.bf16.msra.mxu0 0
          %971 = vmatpush.bf16.msra.mxu0 %v962
          %972 = vmatmul.bf16.gmra.mxu0 %v959
          %v973 = vpop.f32.mrf.mxu0
          %v974 = vadd.f32 0.0, %v973
          %v975 = vpop.f32.mrf.mxu0
          %976 = vdwg.mxu0
          %v978 = vsel %vm918, %v909, 0
          %v981 = vsel %vm922, %v913, 0
          %983 = vmatpush.bf16.msra.mxu0 0
          %984 = vmatpush.bf16.msra.mxu0 0
          %985 = vmatpush.bf16.msra.mxu0 0
          %986 = vmatpush.bf16.msra.mxu0 0
          %987 = vmatpush.bf16.msra.mxu0 0
          %988 = vmatpush.bf16.msra.mxu0 0
          %989 = vmatpush.bf16.msra.mxu0 0
          %990 = vmatpush.bf16.msra.mxu0 %v981
          %991 = vmatmul.bf16.gmra.mxu0 %v978
          %v992 = vpop.f32.mrf.mxu0
          %v993 = vadd.f32 0.0, %v992
          %v994 = vpop.f32.mrf.mxu0
          %995 = vdwg.mxu0
          %v996 = vlaneseq
          %v997 = vshrl.u32 %v996, 7
          %v998 = vlaneseq
          %v999 = vand.u32 %v998, 127
          %s1000 = smul.u32 %s32, 8
          %v1001 = vstv %s1000
          %v1002 = vadd.s32 %v1001, %v997
          %s1003 = smul.u32 %s33, 8
          %v1004 = vstv %s1003
          %v1005 = vadd.s32 %v1004, %v999
          %vm1006 = vcmp.ge.s32.totalorder %v1002, %v1005
          %v1007 = vsel %vm1006, 1, 0
          %vm1008 = vcmp.eq.s32.totalorder %v1007, 1
          %v1009 = vsel %vm1008, %v936, -1e+30
          %v1010 = vsel %vm1008, %v955, -1e+30
          %v1011 = vsel %vm1008, %v974, -1e+30
          %v1012 = vsel %vm1008, %v993, -1e+30
          %v1013 = vld [vmem:[#allocation2] sm:$0xff]
          %v1014 = vld [vmem:[#allocation2 + $0x8] sm:$0xff]
          %v1015 = vld [vmem:[#allocation2 + $0x10] sm:$0xff]
          %v1016 = vld [vmem:[#allocation2 + $0x18] sm:$0xff]
          %v1017 = vsel %vm918, %v1009, -inf
          %1018 = vmax.xlane.f32.xlu0 %v1017
          %v1019 = vpop.xlane.xlu0 %1018
          %v1020 = vsel %vm918, %v1010, -inf
          %1021 = vmax.xlane.f32.xlu0 %v1020
          %v1022 = vpop.xlane.xlu0 %1021
          %v1023 = vsel %vm918, %v1011, -inf
          %1024 = vmax.xlane.f32.xlu0 %v1023
          %v1025 = vpop.xlane.xlu0 %1024
          %v1026 = vsel %vm918, %v1012, -inf
          %1027 = vmax.xlane.f32.xlu0 %v1026
          %v1028 = vpop.xlane.xlu0 %1027
          %v1029 = vmax.f32 %v1013, %v1019
          %v1030 = vmax.f32 %v1014, %v1022
          %v1031 = vmax.f32 %v1015, %v1025
          %v1032 = vmax.f32 %v1016, %v1028
          %v1033 = vsub.f32 %v1013, %v1029
          %v1034 = vsub.f32 %v1014, %v1030
          %v1035 = vsub.f32 %v1015, %v1031
          %v1036 = vsub.f32 %v1016, %v1032
          %v1037 = vmul.f32 %v1033, 1.442695
          %v1038 = vpow.pop %v1037
          %v1039 = vmul.f32 %v1034, 1.442695
          %v1040 = vpow.pop %v1039
          %v1041 = vmul.f32 %v1035, 1.442695
          %v1042 = vpow.pop %v1041
          %v1043 = vmul.f32 %v1036, 1.442695
          %v1044 = vpow.pop %v1043
          %1046 = vset.pattern.permute.xlu0 0
          %1047 = vperm.xlu0 %1046, %v1029
          %v1048 = vpop.permute.xlu0 %1047
          %1051 = vset.pattern.permute.xlu0 0
          %1052 = vperm.xlu0 %1051, %v1030
          %v1053 = vpop.permute.xlu0 %1052
          %1056 = vset.pattern.permute.xlu0 0
          %1057 = vperm.xlu0 %1056, %v1031
          %v1058 = vpop.permute.xlu0 %1057
          %1061 = vset.pattern.permute.xlu0 0
          %1062 = vperm.xlu0 %1061, %v1032
          %v1063 = vpop.permute.xlu0 %1062
          %v1065 = vsub.f32 %v1009, %v1048
          %v1066 = vsub.f32 %v1010, %v1053
          %v1067 = vsub.f32 %v1011, %v1058
          %v1068 = vsub.f32 %v1012, %v1063
          %v1069 = vpack.c.bf16 %v1065, %v1065
          %v1070 = vpack.c.bf16 %v1066, %v1066
          %v1071 = vpack.c.bf16 %v1067, %v1067
          %v1072 = vpack.c.bf16 %v1068, %v1068
          %v1073 = vunpack.c.l.bf16 %v1069
          %v1074 = vunpack.c.l.bf16 %v1070
          %v1075 = vunpack.c.l.bf16 %v1071
          %v1076 = vunpack.c.l.bf16 %v1072
          %v1077 = vmul.f32 %v1073, 1.442695
          %v1078 = vpow.pop %v1077
          %v1079 = vmul.f32 %v1074, 1.442695
          %v1080 = vpow.pop %v1079
          %v1081 = vmul.f32 %v1075, 1.442695
          %v1082 = vpow.pop %v1081
          %v1083 = vmul.f32 %v1076, 1.442695
          %v1084 = vpow.pop %v1083
          %v1085 = vpack.c.bf16 %v1078, %v1078
          %v1086 = vpack.c.bf16 %v1080, %v1080
          %v1087 = vpack.c.bf16 %v1082, %v1082
          %v1088 = vpack.c.bf16 %v1084, %v1084
          %v1089 = vld [vmem:[#allocation3] sm:$0xff]
          %v1090 = vld [vmem:[#allocation3 + $0x8] sm:$0xff]
          %v1091 = vld [vmem:[#allocation3 + $0x10] sm:$0xff]
          %v1092 = vld [vmem:[#allocation3 + $0x18] sm:$0xff]
          %v1093 = vmul.f32 %v1038, %v1089
          %v1094 = vmul.f32 %v1040, %v1090
          %v1095 = vmul.f32 %v1042, %v1091
          %v1096 = vmul.f32 %v1044, %v1092
          %v1097 = vunpack.c.l.bf16 %v1085
          %v1098 = vunpack.c.l.bf16 %v1086
          %v1099 = vunpack.c.l.bf16 %v1087
          %v1100 = vunpack.c.l.bf16 %v1088
          %v1101 = vsel %vm918, %v1097, 0.0
          %1102 = vadd.xlane.f32.xlu0 %v1101
          %v1103 = vpop.xlane.xlu0 %1102
          %v1104 = vsel %vm918, %v1098, 0.0
          %1105 = vadd.xlane.f32.xlu0 %v1104
          %v1106 = vpop.xlane.xlu0 %1105
          %v1107 = vsel %vm918, %v1099, 0.0
          %1108 = vadd.xlane.f32.xlu0 %v1107
          %v1109 = vpop.xlane.xlu0 %1108
          %v1110 = vsel %vm918, %v1100, 0.0
          %1111 = vadd.xlane.f32.xlu0 %v1110
          %v1112 = vpop.xlane.xlu0 %1111
          %v1113 = vadd.f32 %v1093, %v1103
          %v1114 = vadd.f32 %v1094, %v1106
          %v1115 = vadd.f32 %v1095, %v1109
          %v1116 = vadd.f32 %v1096, %v1112
          %vm1117 = vcmask 7168
          %1118 = vst.msk [vmem:[#allocation3] sm:$0xff] %vm1117, %v1113
          %1119 = vst.msk [vmem:[#allocation3 + $0x8] sm:$0xff] %vm1117, %v1114
          %1120 = vst.msk [vmem:[#allocation3 + $0x10] sm:$0xff] %vm1117, %v1115
          %1121 = vst.msk [vmem:[#allocation3 + $0x18] sm:$0xff] %vm1117, %v1116
          %v1122 = vld [vmem:[#allocation4] sm:$0xff]
          %v1123 = vld [vmem:[#allocation4 + $0x8] sm:$0xff]
          %v1124 = vld [vmem:[#allocation4 + $0x10] sm:$0xff]
          %v1125 = vld [vmem:[#allocation4 + $0x18] sm:$0xff]
          %1127 = vset.pattern.permute.xlu0 0
          %1128 = vperm.xlu0 %1127, %v1038
          %v1129 = vpop.permute.xlu0 %1128
          %1132 = vset.pattern.permute.xlu0 0
          %1133 = vperm.xlu0 %1132, %v1040
          %v1134 = vpop.permute.xlu0 %1133
          %1137 = vset.pattern.permute.xlu0 0
          %1138 = vperm.xlu0 %1137, %v1042
          %v1139 = vpop.permute.xlu0 %1138
          %1142 = vset.pattern.permute.xlu0 0
          %1143 = vperm.xlu0 %1142, %v1044
          %v1144 = vpop.permute.xlu0 %1143
          %v1146 = vmul.f32 %v1129, %v1122
          %v1147 = vmul.f32 %v1134, %v1123
          %v1148 = vmul.f32 %v1139, %v1124
          %v1149 = vmul.f32 %v1144, %v1125
          %v1151 = vsel %vm918, %v1085, 0
          %v1154 = vsel %vm922, %v914, 0
          %1156 = vmatpush.bf16.msra.mxu0 0
          %1157 = vmatpush.bf16.msra.mxu0 0
          %1158 = vmatpush.bf16.msra.mxu0 0
          %1159 = vmatpush.bf16.msra.mxu0 0
          %1160 = vmatpush.bf16.msra.mxu0 0
          %1161 = vmatpush.bf16.msra.mxu0 0
          %1162 = vmatpush.bf16.msra.mxu0 0
          %1163 = vmatpush.bf16.msra.mxu0 %v1154
          %1164 = vmatmul.bf16.gmra.mxu0 %v1151
          %v1165 = vpop.f32.mrf.mxu0
          %v1166 = vadd.f32 0.0, %v1165
          %v1167 = vpop.f32.mrf.mxu0
          %1168 = vdwg.mxu0
          %v1170 = vsel %vm918, %v1086, 0
          %v1173 = vsel %vm922, %v915, 0
          %1175 = vmatpush.bf16.msra.mxu0 0
          %1176 = vmatpush.bf16.msra.mxu0 0
          %1177 = vmatpush.bf16.msra.mxu0 0
          %1178 = vmatpush.bf16.msra.mxu0 0
          %1179 = vmatpush.bf16.msra.mxu0 0
          %1180 = vmatpush.bf16.msra.mxu0 0
          %1181 = vmatpush.bf16.msra.mxu0 0
          %1182 = vmatpush.bf16.msra.mxu0 %v1173
          %1183 = vmatmul.bf16.gmra.mxu0 %v1170
          %v1184 = vpop.f32.mrf.mxu0
          %v1185 = vadd.f32 0.0, %v1184
          %v1186 = vpop.f32.mrf.mxu0
          %1187 = vdwg.mxu0
          %v1189 = vsel %vm918, %v1087, 0
          %v1192 = vsel %vm922, %v916, 0
          %1194 = vmatpush.bf16.msra.mxu0 0
          %1195 = vmatpush.bf16.msra.mxu0 0
          %1196 = vmatpush.bf16.msra.mxu0 0
          %1197 = vmatpush.bf16.msra.mxu0 0
          %1198 = vmatpush.bf16.msra.mxu0 0
          %1199 = vmatpush.bf16.msra.mxu0 0
          %1200 = vmatpush.bf16.msra.mxu0 0
          %1201 = vmatpush.bf16.msra.mxu0 %v1192
          %1202 = vmatmul.bf16.gmra.mxu0 %v1189
          %v1203 = vpop.f32.mrf.mxu0
          %v1204 = vadd.f32 0.0, %v1203
          %v1205 = vpop.f32.mrf.mxu0
          %1206 = vdwg.mxu0
          %v1208 = vsel %vm918, %v1088, 0
          %v1211 = vsel %vm922, %v917, 0
          %1213 = vmatpush.bf16.msra.mxu0 0
          %1214 = vmatpush.bf16.msra.mxu0 0
          %1215 = vmatpush.bf16.msra.mxu0 0
          %1216 = vmatpush.bf16.msra.mxu0 0
          %1217 = vmatpush.bf16.msra.mxu0 0
          %1218 = vmatpush.bf16.msra.mxu0 0
          %1219 = vmatpush.bf16.msra.mxu0 0
          %1220 = vmatpush.bf16.msra.mxu0 %v1211
          %1221 = vmatmul.bf16.gmra.mxu0 %v1208
          %v1222 = vpop.f32.mrf.mxu0
          %v1223 = vadd.f32 0.0, %v1222
          %v1224 = vpop.f32.mrf.mxu0
          %1225 = vdwg.mxu0
          %v1226 = vadd.f32 %v1146, %v1166
          %v1227 = vadd.f32 %v1147, %v1185
          %v1228 = vadd.f32 %v1148, %v1204
          %v1229 = vadd.f32 %v1149, %v1223
          %1230 = vst.msk [vmem:[#allocation4] sm:$0xff] %vm918, %v1226
          %1231 = vst.msk [vmem:[#allocation4 + $0x8] sm:$0xff] %vm918, %v1227
          %1232 = vst.msk [vmem:[#allocation4 + $0x10] sm:$0xff] %vm918, %v1228
          %1233 = vst.msk [vmem:[#allocation4 + $0x18] sm:$0xff] %vm918, %v1229
          %1234 = vst.msk [vmem:[#allocation2] sm:$0xff] %vm1117, %v1029
          %1235 = vst.msk [vmem:[#allocation2 + $0x8] sm:$0xff] %vm1117, %v1030
          %1236 = vst.msk [vmem:[#allocation2 + $0x10] sm:$0xff] %vm1117, %v1031
          %1237 = vst.msk [vmem:[#allocation2 + $0x18] sm:$0xff] %vm1117, %v1032
        $region80: #{block_forward.3} parent=67 // pred_fallthru
          _
        %p1238 = scmp.eq.s32.totalorder %s33, %s32
        // Predicated region
        $region81: #{block_forward.3} parent=67 // pred_check
          %p1239 = pneg %p1238
        $region82: #{block_forward.3} parent=67 // pred_check_branch
          %1241 = sbr.rel (%p1239) target = $region84
        $region83: #{block_forward.3} parent=67 // pred_region
          %v1242 = vld [vmem:[%s529] sm:$0xff]
          %v1243 = vld [vmem:[#allocation3] sm:$0xff]
          %v1244 = vld [vmem:[#allocation3 + $0x8] sm:$0xff]
          %v1245 = vld [vmem:[#allocation3 + $0x10] sm:$0xff]
          %v1246 = vld [vmem:[#allocation3 + $0x18] sm:$0xff]
          %v1247 = vrcp.pop %v1243
          %v1248 = vrcp.pop %v1244
          %v1249 = vrcp.pop %v1245
          %v1250 = vrcp.pop %v1246
          %v1251 = vld [vmem:[#allocation4] sm:$0xff]
          %1253 = vset.pattern.permute.xlu0 0
          %1254 = vperm.xlu0 %1253, %v1247
          %v1255 = vpop.permute.xlu0 %1254
          %v1257 = vmul.f32 %v1251, %v1255
          %v1258 = vpack.c.bf16 %v1257, %v1257
          %vm1259 = vcmask 60416
          %1260 = vst.msk [vmem:[#allocation5] sm:$0xf] %vm1259, %v1258
          %s1261 = scalar_lea.vmem [#allocation4], 8
          %v1262 = vld [vmem:[%s1261] sm:$0xff]
          %1264 = vset.pattern.permute.xlu0 0
          %1265 = vperm.xlu0 %1264, %v1248
          %v1266 = vpop.permute.xlu0 %1265
          %v1268 = vmul.f32 %v1262, %v1266
          %v1269 = vpack.c.bf16 %v1268, %v1268
          %1271 = vrot.lane.b32.xlu0 %v1269, 8
          %v1272 = vpop.permute.xlu0 %1271
          %vm1274 = vcmask 126016
          %1275 = vst.msk [vmem:[#allocation5] sm:$0xf] %vm1274, %v1272
          %s1276 = scalar_lea.vmem [#allocation4], 16
          %v1277 = vld [vmem:[%s1276] sm:$0xff]
          %1279 = vset.pattern.permute.xlu0 0
          %1280 = vperm.xlu0 %1279, %v1249
          %v1281 = vpop.permute.xlu0 %1280
          %v1283 = vmul.f32 %v1277, %v1281
          %v1284 = vpack.c.bf16 %v1283, %v1283
          %1286 = vrot.lane.b32.xlu0 %v1284, 16
          %v1287 = vpop.permute.xlu0 %1286
          %vm1289 = vcmask 191616
          %1290 = vst.msk [vmem:[#allocation5] sm:$0xf] %vm1289, %v1287
          %s1291 = scalar_lea.vmem [#allocation4], 24
          %v1292 = vld [vmem:[%s1291] sm:$0xff]
          %1294 = vset.pattern.permute.xlu0 0
          %1295 = vperm.xlu0 %1294, %v1250
          %v1296 = vpop.permute.xlu0 %1295
          %v1298 = vmul.f32 %v1292, %v1296
          %v1299 = vpack.c.bf16 %v1298, %v1298
          %1301 = vrot.lane.b32.xlu0 %v1299, 24
          %v1302 = vpop.permute.xlu0 %1301
          %vm1304 = vcmask 257216
          %1305 = vst.msk [vmem:[#allocation5] sm:$0xf] %vm1304, %v1302
          %v1306 = vld [vmem:[#allocation5] sm:$0xf]
          %v1307 = vld [vmem:[%s4] sm:$0xf]
          %v1308 = vld [vmem:[%s4 + $0x4] sm:$0xf]
          %v1309 = vld [vmem:[%s4 + $0x8] sm:$0xf]
          %v1310 = vld [vmem:[%s4 + $0xc] sm:$0xf]
          %v1311 = vld [vmem:[%s5] sm:$0x1]
          %v1313 = vperm.slane %v1311, 0
          %v1319 = vunpack.c.l.b16 %v1307
          %v1320 = vunpack.c.l.b16 %v1308
          %v1321 = vunpack.c.l.b16 %v1309
          %v1322 = vunpack.c.l.b16 %v1310
          %v1323 = vpack.c.b16 %v1320, %v1319
          %v1324 = vpack.c.b16 %v1322, %v1321
          %vm1327 = vcmask 261120
          %v1329 = vsel %vm1327, %v1306, 0
          %1331 = vmatpush.bf16.msra.mxu0 0
          %1332 = vmatpush.bf16.msra.mxu0 0
          %1333 = vmatpush.bf16.msra.mxu0 0
          %1334 = vmatpush.bf16.msra.mxu0 0
          %1335 = vmatpush.bf16.msra.mxu0 0
          %1336 = vmatpush.bf16.msra.mxu0 0
          %1337 = vmatpush.bf16.msra.mxu0 %v1324
          %1338 = vmatpush.bf16.msra.mxu0 %v1323
          %1339 = vmatmul.bf16.gmra.mxu0 %v1329
          %v1340 = vpop.f32.mrf.mxu0
          %v1341 = vadd.f32 %v1313, %v1340
          %v1342 = vpop.f32.mrf.mxu0
          %1343 = vdwg.mxu0
          %v1344 = vadd.f32 %v1242, %v1341
          %v1345 = vld [vmem:[%s6] sm:$0x1]
          %v1346 = vld [vmem:[%s7] sm:$0x1]
          %v1347 = vsel %vm1327, %v1344, 0.0
          %1348 = vadd.xlane.f32.xlu0 %v1347
          %v1349 = vpop.xlane.xlu0 %1348
          %v1350 = vrcp.pop 32.0
          %v1351 = vmul.f32 32.0, %v1350
          %v1352 = vsub.f32 1.0, %v1351
          %v1353 = vmul.f32 %v1350, %v1352
          %v1354 = vadd.f32 %v1350, %v1353
          %vm1355 = vweird.f32 %v1350
          %v1356 = vsel %vm1355, %v1350, %v1354
          %v1357 = vmul.f32 %v1349, %v1356
          %v1358 = vsub.f32 %v1344, %v1357
          %v1359 = vmul.f32 %v1358, %v1358
          %v1360 = vsel %vm1327, %v1359, 0.0
          %1361 = vadd.xlane.f32.xlu0 %v1360
          %v1362 = vpop.xlane.xlu0 %1361
          %v1363 = vmul.f32 %v1362, %v1356
          %v1364 = vadd.f32 %v1363, 1e-05
          %v1365 = vrsqrt.pop %v1364
          %v1366 = vmul.f32 %v1365, %v1364
          %v1367 = vmul.f32 %v1366, %v1365
          %v1368 = vmul.f32 0.5, %v1367
          %v1369 = vsub.f32 1.5, %v1368
          %v1370 = vmul.f32 %v1365, %v1369
          %vm1371 = vweird.f32 %v1364
          %vm1372 = vweird.f32 %v1365
          %vm1373 = vmor %vm1371, %vm1372
          %v1374 = vsel %vm1373, %v1365, %v1370
          %v1375 = vmul.f32 %v1358, %v1374
          %v1377 = vperm.slane %v1345, 0
          %v1379 = vmul.f32 %v1375, %v1377
          %v1381 = vperm.slane %v1346, 0
          %v1383 = vadd.f32 %v1379, %v1381
          %v1384 = vpack.c.bf16 %v1383, %v1383
          %v1385 = vld [vmem:[%s8] sm:$0xf]
          %v1386 = vld [vmem:[%s8 + $0x4] sm:$0xf]
          %v1387 = vld [vmem:[%s8 + $0x8] sm:$0xf]
          %v1388 = vld [vmem:[%s8 + $0xc] sm:$0xf]
          %v1389 = vld [vmem:[%s9] sm:$0x1]
          %v1391 = vperm.slane %v1389, 0
          %v1397 = vunpack.c.l.b16 %v1385
          %v1398 = vunpack.c.l.b16 %v1386
          %v1399 = vunpack.c.l.b16 %v1387
          %v1400 = vunpack.c.l.b16 %v1388
          %v1401 = vpack.c.b16 %v1398, %v1397
          %v1402 = vpack.c.b16 %v1400, %v1399
          %v1406 = vsel %vm1327, %v1384, 0
          %1408 = vmatpush.bf16.msra.mxu0 0
          %1409 = vmatpush.bf16.msra.mxu0 0
          %1410 = vmatpush.bf16.msra.mxu0 0
          %1411 = vmatpush.bf16.msra.mxu0 0
          %1412 = vmatpush.bf16.msra.mxu0 0
          %1413 = vmatpush.bf16.msra.mxu0 0
          %1414 = vmatpush.bf16.msra.mxu0 %v1402
          %1415 = vmatpush.bf16.msra.mxu0 %v1401
          %1416 = vmatmul.bf16.gmra.mxu0 %v1406
          %v1417 = vpop.f32.mrf.mxu0
          %v1418 = vadd.f32 %v1391, %v1417
          %v1419 = vpop.f32.mrf.mxu0
          %1420 = vdwg.mxu0
          %v1421 = vmul.f32 %v1418, 0.5
          %v1422 = vmul.f32 %v1418, 0.044715
          %v1423 = vmul.f32 %v1422, %v1418
          %v1424 = vmul.f32 %v1423, %v1418
          %v1425 = vadd.f32 %v1418, %v1424
          %v1426 = vmul.f32 %v1425, 0.7978846
          %v1427 = vtanh.pop %v1426
          %v1428 = vadd.f32 %v1427, 1.0
          %v1429 = vmul.f32 %v1421, %v1428
          %v1430 = vpack.c.bf16 %v1429, %v1429
          %v1431 = vld [vmem:[%s10] sm:$0xf]
          %v1432 = vld [vmem:[%s10 + $0x4] sm:$0xf]
          %v1433 = vld [vmem:[%s10 + $0x8] sm:$0xf]
          %v1434 = vld [vmem:[%s10 + $0xc] sm:$0xf]
          %v1435 = vld [vmem:[%s10 + $0x10] sm:$0xf]
          %v1436 = vld [vmem:[%s10 + $0x14] sm:$0xf]
          %v1437 = vld [vmem:[%s10 + $0x18] sm:$0xf]
          %v1438 = vld [vmem:[%s10 + $0x1c] sm:$0xf]
          %v1439 = vld [vmem:[%s10 + $0x20] sm:$0xf]
          %v1440 = vld [vmem:[%s10 + $0x24] sm:$0xf]
          %v1441 = vld [vmem:[%s10 + $0x28] sm:$0xf]
          %v1442 = vld [vmem:[%s10 + $0x2c] sm:$0xf]
          %v1443 = vld [vmem:[%s10 + $0x30] sm:$0xf]
          %v1444 = vld [vmem:[%s10 + $0x34] sm:$0xf]
          %v1445 = vld [vmem:[%s10 + $0x38] sm:$0xf]
          %v1446 = vld [vmem:[%s10 + $0x3c] sm:$0xf]
          %v1447 = vld [vmem:[%s11] sm:$0x1]
          %v1449 = vperm.slane %v1447, 0
          %v1467 = vunpack.c.l.b16 %v1431
          %v1468 = vunpack.c.l.b16 %v1432
          %v1469 = vunpack.c.l.b16 %v1433
          %v1470 = vunpack.c.l.b16 %v1434
          %v1471 = vunpack.c.l.b16 %v1435
          %v1472 = vunpack.c.l.b16 %v1436
          %v1473 = vunpack.c.l.b16 %v1437
          %v1474 = vunpack.c.l.b16 %v1438
          %v1475 = vunpack.c.l.b16 %v1439
          %v1476 = vunpack.c.l.b16 %v1440
          %v1477 = vunpack.c.l.b16 %v1441
          %v1478 = vunpack.c.l.b16 %v1442
          %v1479 = vunpack.c.l.b16 %v1443
          %v1480 = vunpack.c.l.b16 %v1444
          %v1481 = vunpack.c.l.b16 %v1445
          %v1482 = vunpack.c.l.b16 %v1446
          %v1483 = vpack.c.b16 %v1468, %v1467
          %v1484 = vpack.c.b16 %v1470, %v1469
          %v1485 = vpack.c.b16 %v1472, %v1471
          %v1486 = vpack.c.b16 %v1474, %v1473
          %v1487 = vpack.c.b16 %v1476, %v1475
          %v1488 = vpack.c.b16 %v1478, %v1477
          %v1489 = vpack.c.b16 %v1480, %v1479
          %v1490 = vpack.c.b16 %v1482, %v1481
          %1499 = vmatpush.bf16.msra.mxu0 %v1490
          %1500 = vmatpush.bf16.msra.mxu0 %v1489
          %1501 = vmatpush.bf16.msra.mxu0 %v1488
          %1502 = vmatpush.bf16.msra.mxu0 %v1487
          %1503 = vmatpush.bf16.msra.mxu0 %v1486
          %1504 = vmatpush.bf16.msra.mxu0 %v1485
          %1505 = vmatpush.bf16.msra.mxu0 %v1484
          %1506 = vmatpush.bf16.msra.mxu0 %v1483
          %1507 = vmatmul.bf16.gmra.mxu0 %v1430
          %v1508 = vpop.f32.mrf.mxu0
          %v1509 = vadd.f32 %v1449, %v1508
          %v1510 = vpop.f32.mrf.mxu0
          %1511 = vdwg.mxu0
          %v1512 = vadd.f32 %v1344, %v1509
          %1513 = vst.msk [vmem:[%s522] sm:$0xff] %vm1327, %v1512
        $region84: #{block_forward.3} parent=67 // pred_fallthru
          _
        %s1514 = sand.u32 %s343, 1
        %s1515 = scalar_lea.sflag [#allocation7], %s1514
        %s1516 = sand.u32 %s343, 1
        %s1517 = smul.addr %s1516, 8
        %s1518 = scalar_lea.vmem [#allocation6], %s1517
        // Predicated region
        $region85: #{block_forward.3} parent=67 // pred_check
          %p1519 = pneg %p353
        $region86: #{block_forward.3} parent=67 // pred_check_branch
          %1521 = sbr.rel (%p1519) target = $region88
        $region87: #{block_forward.3} parent=67 // pred_region
          %1523 = vsyncadd %s1515, 0
          %s1524 = sadd.s32 %s32, %s31
          %s1525 = smul.addr %s1524, 8
          %s1526 = scalar_lea.hbm %s12, %s1525
          %s1528 = sshll.u32 %s1518, 4
          %s1529 = int_to_ptr.vmem [resolvable:$true] %s1528
          %s1530 = sshll.u32 %s1526, 4
          %s1531 = int_to_ptr.hbm [resolvable:$true] %s1530
          %1533 = dma.vmem_to_hbm [thread:$0]  %s1529, 128, %s1531, %s1515
        $region88: #{block_forward.3} parent=67 // pred_fallthru
          _
      $region68: #{block_forward.3} parent=5 // pred_fallthru
        _
      %p1534 = scmp.le.s32.totalorder 2, %s21
      // Predicated region
      $region89: #{block_forward.3} parent=5 // pred_check
        %p1535 = pneg %p1534
      $region90: #{block_forward.3} parent=5 // pred_check_branch
        %1537 = sbr.rel (%p1535) target = $region92
      $region91: #{block_forward.3} parent=5 // pred_region
        %s1538 = ssub.s32 %s21, 2
        // Predicated region
        $region93: #{block_forward.3} parent=91 // pred_check
          %p1539 = pneg %p359
        $region94: #{block_forward.3} parent=91 // pred_check_branch
          %1541 = sbr.rel (%p1539) target = $region96
        $region95: #{block_forward.3} parent=91 // pred_region
          %s1542 = sand.u32 %s344, 1
          %s1543 = scalar_lea.sflag [#allocation7], %s1542
          %s1544 = sand.u32 %s344, 1
          %s1545 = smul.addr %s1544, 8
          %s1546 = scalar_lea.vmem [#allocation6], %s1545
          %1548 = dma.done %s1543, 128
        $region96: #{block_forward.3} parent=91 // pred_fallthru
          _
      $region92: #{block_forward.3} parent=5 // pred_fallthru
        _
    $region6: #{block_forward.3} parent=1 // loop_footer
      %s25 = sadd.s32 1, %s21
    $region7: #{block_forward.3} parent=1 // loop_footer_branch
      %20 = sbr.rel target = $region3
    $region8: #{block_forward.3} parent=1 // loop_exit
      _
    %1549 = vsyncpa [#allocation7], 1
    %s1550 = scalar_lea.sflag [#allocation7], 1
    %1551 = vsyncpa %s1550, 1

</llo_original>
